<compile_context>
chip_gen: v7x
topology: tpu7x:2x2x1
jax: 0.10.0
libtpu: 0.0.40
codegen_flags: <defaults>
</compile_context>

<pallas_src>
import functools

import jax
import jax.numpy as jnp
from jax import lax
from jax.experimental import pallas as pl
from jax.experimental.pallas import tpu as pltpu

INIT_WEIGHT_MEAN = -0.009
INIT_WEIGHT_STD = 0.152
BN_EPS = 1e-5
LANE = 128


def _round_up(x, m):
    return (x + m - 1) // m * m


def _pad_axis(a, axis, target):
    if a.shape[axis] == target:
        return a
    pads = [(0, 0)] * a.ndim
    pads[axis] = (0, target - a.shape[axis])
    return jnp.pad(a, pads)


@functools.lru_cache(maxsize=None)
def _vmem_limit_bytes():
    # v5e/v6e: 128 MiB VMEM -> 96 MiB scoped limit; v7x: 64 MiB -> 48 MiB; fallback 32 MiB.
    try:
        cap = getattr(pltpu.get_tpu_info(), "vmem_capacity_bytes", None)
        if cap:
            return int(min(cap * 3 // 4, 96 * 1024 * 1024))
    except Exception:
        pass
    return 32 * 1024 * 1024


def _compiler_params(sem):
    return pltpu.CompilerParams(dimension_semantics=sem,
                                vmem_limit_bytes=_vmem_limit_bytes())


# ---------------------------------------------------------------------------
# Kernel 1: (tk,1,1) temporal conv + BN + ReLU
# ---------------------------------------------------------------------------
def _conv1_kernel(*refs, tk):
    x_refs = refs[:tk]
    w_ref, b_ref, o_ref = refs[tk:tk + 3]
    acc = jnp.dot(x_refs[0][0, 0], w_ref[0], preferred_element_type=jnp.float32)
    for k in range(1, tk):
        acc = acc + jnp.dot(x_refs[k][0, 0], w_ref[k],
                            preferred_element_type=jnp.float32)
    o_ref[0, 0] = jnp.maximum(acc + b_ref[...], 0.0).astype(o_ref.dtype)


def _pick_hw_tile(hw, target=512):
    if hw <= target:
        return hw
    divs8 = [v for v in range(8, target + 1, 8) if hw % v == 0]
    return max(divs8) if divs8 else hw


def conv1_temporal(xt, w, b, *, t_out):
    """xt: (N, T + tk - 1, HW, Cp_in) bf16; w: (tk, Cp_in, Cp_mid) bf16; b: (1, Cp_mid) f32."""
    N, _, HW, Cin = xt.shape
    tk, _, Cout = w.shape
    hwt = _pick_hw_tile(HW)
    in_specs = [pl.BlockSpec((1, 1, hwt, Cin),
                             (lambda n, t, h, _k=k: (n, t + _k, h, 0)))
                for k in range(tk)]
    in_specs += [pl.BlockSpec((tk, Cin, Cout), lambda n, t, h: (0, 0, 0)),
                 pl.BlockSpec((1, Cout), lambda n, t, h: (0, 0))]
    return pl.pallas_call(
        functools.partial(_conv1_kernel, tk=tk),
        out_shape=jax.ShapeDtypeStruct((N, t_out, HW, Cout), jnp.bfloat16),
        grid=(N, t_out, HW // hwt),
        in_specs=in_specs,
        out_specs=pl.BlockSpec((1, 1, hwt, Cout), lambda n, t, h: (n, t, h, 0)),
        compiler_params=_compiler_params(("parallel", "parallel", "parallel")),
    )(*([xt] * tk), w, b)


# ---------------------------------------------------------------------------
# Kernel 2: (1,3,3) conv + BN + ReLU  fused with  (1,1,1) conv + BN + shortcut + ReLU
# ---------------------------------------------------------------------------
def _conv2_tail_kernel(x2_ref, xs_ref, w2_ref, b2_ref, w3_ref, *rest,
                       taps, M, C, use_projection):
    if use_projection:
        wp_ref, b3_ref, o_ref = rest
    else:
        b3_ref, o_ref = rest

    # 9 spatial taps, each a single (M, C) @ (C, C) MXU matmul (phase-folded layout)
    acc = None
    for tap, r0, l0 in taps:
        lhs = x2_ref[0, r0:r0 + M, l0:l0 + C]
        part = jnp.dot(lhs, w2_ref[tap], preferred_element_type=jnp.float32)
        acc = part if acc is None else acc + part
    y2 = jnp.maximum(acc + b2_ref[...], 0.0).astype(jnp.bfloat16)

    # fused (1x1 conv3 + BN) + shortcut + final ReLU
    out = jnp.dot(y2, w3_ref[...], preferred_element_type=jnp.float32)
    if use_projection:
        out = out + jnp.dot(xs_ref[0], wp_ref[...], preferred_element_type=jnp.float32)
    else:
        out = out + xs_ref[0].astype(jnp.float32)        # direct f32 residual add
    o_ref[0] = jnp.maximum(out + b3_ref[...], 0.0).astype(o_ref.dtype)


def conv2_tail(y1_frames, xs_rows, params, *, stride, dilation, Ho, Wo, Hg, Wg,
               use_projection):
    """y1_frames: (NT, H, W, Cmid) bf16; xs_rows: (NT, Ho*Wg, Cp_in)."""
    NT, H, W, C = y1_frames.shape
    s, d = stride, dilation
    Hp, Wp = s * Hg, s * Wg

    # halo pad + fold H/W stride phases into lanes: (NT,Hp,Wp,C) -> (NT, Hg*Wg, s*s*C)
    # TODO(synk): handle the halo in-kernel to avoid this wrapper-side copy.
    xp = jnp.pad(y1_frames, ((0, 0), (d, Hp - H - d), (d, Wp - W - d), (0, 0)))
    xp = xp.reshape(NT, Hg, s, Wg, s, C).transpose(0, 1, 3, 2, 4, 5)
    xp = xp.reshape(NT, Hg * Wg, s * s * C)

    M = Ho * Wg
    taps = []
    for ih in range(3):
        qh, ph = divmod(ih * d, s)
        for iw in range(3):
            qw, pw = divmod(iw * d, s)
            taps.append((ih * 3 + iw, qh * Wg + qw, (ph * s + pw) * C))
    taps = tuple(taps)

    w2, b2, w3, b3 = params["w2"], params["b2"], params["w3"], params["b3"]
    Cout = w3.shape[1]
    Cin_s = xs_rows.shape[-1]

    kernel = functools.partial(_conv2_tail_kernel, taps=taps, M=M, C=C,
                               use_projection=use_projection)
    in_specs = [
        pl.BlockSpec((1, Hg * Wg, s * s * C), lambda m: (m, 0, 0)),
        pl.BlockSpec((1, M, Cin_s), lambda m: (m, 0, 0)),
        pl.BlockSpec((9, C, C), lambda m: (0, 0, 0)),
        pl.BlockSpec((1, C), lambda m: (0, 0)),
        pl.BlockSpec((C, Cout), lambda m: (0, 0)),
    ]
    args = [xp, xs_rows, w2, b2, w3]
    if use_projection:
        in_specs.append(pl.BlockSpec((Cin_s, Cout), lambda m: (0, 0)))
        args.append(params["wp"])
    in_specs.append(pl.BlockSpec((1, Cout), lambda m: (0, 0)))
    args.append(b3)

    return pl.pallas_call(
        kernel,
        out_shape=jax.ShapeDtypeStruct((NT, M, Cout), jnp.bfloat16),
        grid=(NT,),
        in_specs=in_specs,
        out_specs=pl.BlockSpec((1, M, Cout), lambda m: (m, 0, 0)),
        compiler_params=_compiler_params(("parallel",)),
    )(*args)


# ---------------------------------------------------------------------------
# Parameter preparation: fold inference-mode BN into weights, pad channels, bf16
# ---------------------------------------------------------------------------
def _fold_bn(w_cols_last, gamma, beta, mean, var, *, eps):
    scale = gamma / jnp.sqrt(var + eps)
    return w_cols_last * scale, beta - mean * scale


def prepare_params(wt, *, dim_in, dim_out, dim_inner, eps, use_projection):
    cp_in = _round_up(dim_in, LANE)
    cp_mid = _round_up(dim_inner, LANE)
    cp_out = _round_up(dim_out, LANE)

    def fresh_bn(c):  # gamma, beta, running_mean, running_var at init
        return (jnp.ones((c,)), jnp.zeros((c,)), jnp.zeros((c,)), jnp.ones((c,)))

    # conv1: (Cmid, Cin, tk, 1, 1) -> per-tap (tk, Cin, Cmid)
    w1 = jnp.transpose(wt["c1"][:, :, :, 0, 0], (2, 1, 0))
    w1, b1 = _fold_bn(w1, *fresh_bn(dim_inner), eps=eps)
    w1 = _pad_axis(_pad_axis(w1, 1, cp_in), 2, cp_mid).astype(jnp.bfloat16)
    b1 = _pad_axis(b1.reshape(1, -1), 1, cp_mid).astype(jnp.float32)

    # conv2: (Cmid, Cmid, 1, 3, 3) -> per-tap (9, Cin, Cout), tap = ih*3 + iw
    w2 = jnp.transpose(wt["c2"][:, :, 0], (2, 3, 1, 0)).reshape(9, dim_inner, dim_inner)
    w2, b2 = _fold_bn(w2, *fresh_bn(dim_inner), eps=eps)
    w2 = _pad_axis(_pad_axis(w2, 1, cp_mid), 2, cp_mid).astype(jnp.bfloat16)
    b2 = _pad_axis(b2.reshape(1, -1), 1, cp_mid).astype(jnp.float32)

    # conv3: (Cout, Cmid, 1, 1, 1) -> (Cmid, Cout)
    w3 = wt["c3"].reshape(dim_out, dim_inner).T
    w3, b3 = _fold_bn(w3, *fresh_bn(dim_out), eps=eps)
    w3 = _pad_axis(_pad_axis(w3, 0, cp_mid), 1, cp_out).astype(jnp.bfloat16)

    params = dict(w1=w1, b1=b1, w2=w2, b2=b2, w3=w3)
    if use_projection:
        wp = wt["cp"].reshape(dim_out, dim_in).T
        wp, bp = _fold_bn(wp, *fresh_bn(dim_out), eps=eps)
        params["wp"] = _pad_axis(_pad_axis(wp, 0, cp_in), 1, cp_out).astype(jnp.bfloat16)
        b3 = b3 + bp
    params["b3"] = _pad_axis(b3.reshape(1, -1), 1, cp_out).astype(jnp.float32)
    return params


# ---------------------------------------------------------------------------
# ResBlock forward (eval mode)
# ---------------------------------------------------------------------------
def res_block_forward(x_ncdhw, params, *, temp_kernel_size, stride, dilation,
                      dim_out, use_projection):
    N, _, T, H, W = x_ncdhw.shape
    tk = temp_kernel_size                       # assumed odd (standard configs: 1 or 3)
    s, d = stride, dilation
    cp_in = params["w1"].shape[1]
    cp_mid = params["w1"].shape[2]
    cp_out = params["w3"].shape[1]

    # NCDHW -> NTHWC, zero-pad channels to a lane multiple
    x = jnp.transpose(x_ncdhw, (0, 2, 3, 4, 1))
    x = _pad_axis(x, 4, cp_in)                  # f32
    x_bf = x.astype(jnp.bfloat16)

    # --- stage 1: (tk,1,1) conv + BN + ReLU ---
    pad_t = tk // 2
    xt = jnp.pad(x_bf, ((0, 0), (pad_t, pad_t), (0, 0), (0, 0), (0, 0)))
    xt = xt.reshape(N, T + 2 * pad_t, H * W, cp_in)
    y1 = conv1_temporal(xt, params["w1"], params["b1"], t_out=T)   # (N,T,HW,Cmid) bf16
    y1 = y1.reshape(N * T, H, W, cp_mid)

    # --- stage-2/3 geometry (3x3, stride s, dilation d, padding d) ---
    Ho = (H - 1) // s + 1
    Wo = (W - 1) // s + 1
    max_q = (2 * d) // s
    Hg = max(Ho + max_q + (1 if max_q > 0 else 0), -(-(H + d) // s))
    Wg = max(Wo + max_q, -(-(W + d) // s))

    # shortcut rows aligned with the (Ho*Wg) output-row space of the fused kernel
    xs_src = x_bf if use_projection else x      # identity residual stays f32
    xs = xs_src[:, :, ::s, ::s, :][:, :, :Ho, :Wo, :]
    xs = _pad_axis(xs, 3, Wg).reshape(N * T, Ho * Wg, cp_in)

    out = conv2_tail(y1, xs, params, stride=s, dilation=d, Ho=Ho, Wo=Wo,
                     Hg=Hg, Wg=Wg, use_projection=use_projection)   # (NT, Ho*Wg, Cout) bf16

    out = out.reshape(N, T, Ho, Wg, cp_out)[:, :, :, :Wo, :dim_out]
    return jnp.transpose(out.astype(jnp.float32), (0, 4, 1, 2, 3))  # back to NCDHW


# ---------------------------------------------------------------------------
# Pure-JAX reference (lax.conv) for the correctness check
# ---------------------------------------------------------------------------
def ref_forward(x, w_conv, *, tk, stride, dilation, eps, use_projection):
    dn = ("NCDHW", "OIDHW", "NCDHW")

    def conv(z, w, strides, padding, rhs_dilation=(1, 1, 1)):
        return lax.conv_general_dilated(z, w, window_strides=strides, padding=padding,
                                        rhs_dilation=rhs_dilation, dimension_numbers=dn)

    def bn(z):
        return z / jnp.sqrt(1.0 + eps)

    h = conv(x, w_conv["c1"], (1, 1, 1), [(tk // 2, tk // 2), (0, 0), (0, 0)])
    h = jnp.maximum(bn(h), 0.0)
    h = conv(h, w_conv["c2"], (1, stride, stride),
             [(0, 0), (dilation, dilation), (dilation, dilation)],
             rhs_dilation=(1, dilation, dilation))
    h = jnp.maximum(bn(h), 0.0)
    h = bn(conv(h, w_conv["c3"], (1, 1, 1), [(0, 0), (0, 0), (0, 0)]))
    if use_projection:
        p = bn(conv(x, w_conv["cp"], (1, stride, stride), [(0, 0), (0, 0), (0, 0)]))
    else:
        p = x
    return jnp.maximum(p + h, 0.0)


# ---------------------------------------------------------------------------
def _run_case(name, *, dim_in, dim_out, dim_inner, tk, stride, dilation,
              N, T, H, W, seed):
    key = jax.random.PRNGKey(seed)
    k1, k2, k3, kp, kx = jax.random.split(key, 5)

    def init_w(k, shape):
        return INIT_WEIGHT_MEAN + INIT_WEIGHT_STD * jax.random.normal(k, shape, jnp.float32)

    wt = dict(
        c1=init_w(k1, (dim_inner, dim_in, tk, 1, 1)),
        c2=init_w(k2, (dim_inner, dim_inner, 1, 3, 3)),
        c3=init_w(k3, (dim_out, dim_inner, 1, 1, 1)),
    )
    use_projection = (dim_in != dim_out) or (stride != 1)
    if use_projection:
        wt["cp"] = init_w(kp, (dim_out, dim_in, 1, 1, 1))

    params = prepare_params(wt, dim_in=dim_in, dim_out=dim_out, dim_inner=dim_inner,
                            eps=BN_EPS, use_projection=use_projection)
    x = jax.random.normal(kx, (N, dim_in, T, H, W), jnp.float32)

    fwd = jax.jit(functools.partial(res_block_forward, temp_kernel_size=tk,
                                    stride=stride, dilation=dilation,
                                    dim_out=dim_out, use_projection=use_projection))
    out = jax.block_until_ready(fwd(x, params))

    ref = ref_forward(x, wt, tk=tk, stride=stride, dilation=dilation, eps=BN_EPS,
                      use_projection=use_projection)
    Ho = (H - 1) // stride + 1
    Wo = (W - 1) // stride + 1
    assert out.shape == ref.shape == (N, dim_out, T, Ho, Wo), (name, out.shape, ref.shape)
    max_err = float(jnp.max(jnp.abs(out - ref)))
    assert jnp.allclose(out, ref, atol=5e-2, rtol=5e-2), (name, max_err)


if __name__ == "__main__":
    # Projection path: channel change + spatial stride, 3-tap temporal conv.
    _run_case("projection", dim_in=4, dim_out=8, dim_inner=4, tk=3, stride=2,
              dilation=1, N=2, T=4, H=8, W=8, seed=0)
    # Identity path: same channels, stride 1 -> direct f32 residual add (no eye-matmul).
    _run_case("identity", dim_in=8, dim_out=8, dim_inner=4, tk=1, stride=1,
              dilation=1, N=2, T=4, H=8, W=8, seed=1)
    print("KERNEL_OK")
</pallas_src>

<mosaic_0001>
module attributes {stable_mosaic.version = 11 : i64} {
  func.func @_conv1_kernel(%arg0: i32, %arg1: i32, %arg2: i32, %arg3: memref<1x1x64x128xbf16, #tpu.memory_space<vmem>>, %arg4: memref<1x1x64x128xbf16, #tpu.memory_space<vmem>>, %arg5: memref<1x1x64x128xbf16, #tpu.memory_space<vmem>>, %arg6: memref<3x128x128xbf16, #tpu.memory_space<vmem>>, %arg7: memref<1x128xf32, #tpu.memory_space<vmem>>, %arg8: memref<1x1x64x128xbf16, #tpu.memory_space<vmem>>) attributes {dimension_semantics = [#tpu.dimension_semantics<parallel>, #tpu.dimension_semantics<parallel>, #tpu.dimension_semantics<parallel>], iteration_bounds = array<i64: 2, 4, 1>, scalar_prefetch = 0 : i64, scratch_operands = 0 : i64, tpu.core_type = #tpu.core_type<tc>, window_params = [{transform_indices = @transform_0, window_bounds = array<i64: 1, 1, 64, 128>}, {transform_indices = @transform_1, window_bounds = array<i64: 1, 1, 64, 128>}, {transform_indices = @transform_2, window_bounds = array<i64: 1, 1, 64, 128>}, {pipeline_mode = #tpu.pipeline_mode<synchronous>, transform_indices = @transform_3, window_bounds = array<i64: 3, 128, 128>}, {pipeline_mode = #tpu.pipeline_mode<synchronous>, transform_indices = @transform_4, window_bounds = array<i64: 1, 128>}, {transform_indices = @transform_5, window_bounds = array<i64: 1, 1, 64, 128>}]} {
    %c0 = arith.constant 0 : index
    %c0_0 = arith.constant 0 : index
    %c0_1 = arith.constant 0 : index
    %c0_2 = arith.constant 0 : index
    %0 = vector.load %arg3[%c0, %c0_0, %c0_1, %c0_2] : memref<1x1x64x128xbf16, #tpu.memory_space<vmem>>, vector<1x1x64x128xbf16>
    %1 = vector.shape_cast %0 : vector<1x1x64x128xbf16> to vector<64x128xbf16>
    %c0_3 = arith.constant 0 : index
    %c0_4 = arith.constant 0 : index
    %c0_5 = arith.constant 0 : index
    %2 = vector.load %arg6[%c0_3, %c0_4, %c0_5] : memref<3x128x128xbf16, #tpu.memory_space<vmem>>, vector<1x128x128xbf16>
    %3 = vector.shape_cast %2 : vector<1x128x128xbf16> to vector<128x128xbf16>
    %cst = arith.constant dense<0.000000e+00> : vector<64x128xf32>
    %4 = tpu.matmul %1, %3, %cst {dimension_numbers = #tpu.dot_dimension_numbers<[1], [0], [0], [1], [0, 0, 1, 1], [], []>} : vector<64x128xbf16>, vector<128x128xbf16>, vector<64x128xf32> -> vector<64x128xf32>
    %c0_6 = arith.constant 0 : index
    %c0_7 = arith.constant 0 : index
    %c0_8 = arith.constant 0 : index
    %c0_9 = arith.constant 0 : index
    %5 = vector.load %arg4[%c0_6, %c0_7, %c0_8, %c0_9] : memref<1x1x64x128xbf16, #tpu.memory_space<vmem>>, vector<1x1x64x128xbf16>
    %6 = vector.shape_cast %5 : vector<1x1x64x128xbf16> to vector<64x128xbf16>
    %c1 = arith.constant 1 : index
    %c0_10 = arith.constant 0 : index
    %c0_11 = arith.constant 0 : index
    %7 = vector.load %arg6[%c1, %c0_10, %c0_11] : memref<3x128x128xbf16, #tpu.memory_space<vmem>>, vector<1x128x128xbf16>
    %8 = vector.shape_cast %7 : vector<1x128x128xbf16> to vector<128x128xbf16>
    %cst_12 = arith.constant dense<0.000000e+00> : vector<64x128xf32>
    %9 = tpu.matmul %6, %8, %cst_12 {dimension_numbers = #tpu.dot_dimension_numbers<[1], [0], [0], [1], [0, 0, 1, 1], [], []>} : vector<64x128xbf16>, vector<128x128xbf16>, vector<64x128xf32> -> vector<64x128xf32>
    %10 = arith.addf %4, %9 : vector<64x128xf32>
    %c0_13 = arith.constant 0 : index
    %c0_14 = arith.constant 0 : index
    %c0_15 = arith.constant 0 : index
    %c0_16 = arith.constant 0 : index
    %11 = vector.load %arg5[%c0_13, %c0_14, %c0_15, %c0_16] : memref<1x1x64x128xbf16, #tpu.memory_space<vmem>>, vector<1x1x64x128xbf16>
    %12 = vector.shape_cast %11 : vector<1x1x64x128xbf16> to vector<64x128xbf16>
    %c2 = arith.constant 2 : index
    %c0_17 = arith.constant 0 : index
    %c0_18 = arith.constant 0 : index
    %13 = vector.load %arg6[%c2, %c0_17, %c0_18] : memref<3x128x128xbf16, #tpu.memory_space<vmem>>, vector<1x128x128xbf16>
    %14 = vector.shape_cast %13 : vector<1x128x128xbf16> to vector<128x128xbf16>
    %cst_19 = arith.constant dense<0.000000e+00> : vector<64x128xf32>
    %15 = tpu.matmul %12, %14, %cst_19 {dimension_numbers = #tpu.dot_dimension_numbers<[1], [0], [0], [1], [0, 0, 1, 1], [], []>} : vector<64x128xbf16>, vector<128x128xbf16>, vector<64x128xf32> -> vector<64x128xf32>
    %16 = arith.addf %10, %15 : vector<64x128xf32>
    %c0_20 = arith.constant 0 : index
    %c0_21 = arith.constant 0 : index
    %17 = vector.load %arg7[%c0_20, %c0_21] : memref<1x128xf32, #tpu.memory_space<vmem>>, vector<1x128xf32>
    %18 = vector.broadcast %17 : vector<1x128xf32> to vector<64x128xf32>
    %19 = arith.addf %16, %18 : vector<64x128xf32>
    %cst_22 = arith.constant 0.000000e+00 : f32
    %20 = vector.broadcast %cst_22 : f32 to vector<64x128xf32>
    %21 = arith.maximumf %19, %20 : vector<64x128xf32>
    %22 = arith.truncf %21 : vector<64x128xf32> to vector<64x128xbf16>
    %c0_23 = arith.constant 0 : index
    %c0_24 = arith.constant 0 : index
    %c0_25 = arith.constant 0 : index
    %c0_26 = arith.constant 0 : index
    %23 = vector.load %arg8[%c0_23, %c0_24, %c0_25, %c0_26] : memref<1x1x64x128xbf16, #tpu.memory_space<vmem>>, vector<1x1x64x128xbf16>
    %24 = vector.shape_cast %23 : vector<1x1x64x128xbf16> to vector<64x128xbf16>
    %25 = vector.shape_cast %22 : vector<64x128xbf16> to vector<1x1x64x128xbf16>
    tpu.vector_store %arg8[%c0_23, %c0_24, %c0_25, %c0_26], %25 {strides = array<i32>} : memref<1x1x64x128xbf16, #tpu.memory_space<vmem>>, vector<1x1x64x128xbf16>,
    return
  }
  func.func @transform_0(%arg0: i32, %arg1: i32, %arg2: i32) -> (i32, i32, i32, i32) {
    %c0_i32 = arith.constant 0 : i32
    %0 = arith.addi %arg1, %c0_i32 : i32
    %c0_i32_0 = arith.constant 0 : i32
    %c0_i32_1 = arith.constant 0 : i32
    return %arg0, %0, %arg2, %c0_i32_0 : i32, i32, i32, i32
  }
  func.func @transform_1(%arg0: i32, %arg1: i32, %arg2: i32) -> (i32, i32, i32, i32) {
    %c1_i32 = arith.constant 1 : i32
    %0 = arith.addi %arg1, %c1_i32 : i32
    %c0_i32 = arith.constant 0 : i32
    %c0_i32_0 = arith.constant 0 : i32
    return %arg0, %0, %arg2, %c0_i32 : i32, i32, i32, i32
  }
  func.func @transform_2(%arg0: i32, %arg1: i32, %arg2: i32) -> (i32, i32, i32, i32) {
    %c2_i32 = arith.constant 2 : i32
    %0 = arith.addi %arg1, %c2_i32 : i32
    %c0_i32 = arith.constant 0 : i32
    %c0_i32_0 = arith.constant 0 : i32
    return %arg0, %0, %arg2, %c0_i32 : i32, i32, i32, i32
  }
  func.func @transform_3(%arg0: i32, %arg1: i32, %arg2: i32) -> (i32, i32, i32) {
    %c0_i32 = arith.constant 0 : i32
    %c0_i32_0 = arith.constant 0 : i32
    %c0_i32_1 = arith.constant 0 : i32
    %c0_i32_2 = arith.constant 0 : i32
    return %c0_i32, %c0_i32_0, %c0_i32_1 : i32, i32, i32
  }
  func.func @transform_4(%arg0: i32, %arg1: i32, %arg2: i32) -> (i32, i32) {
    %c0_i32 = arith.constant 0 : i32
    %c0_i32_0 = arith.constant 0 : i32
    %c0_i32_1 = arith.constant 0 : i32
    return %c0_i32, %c0_i32_0 : i32, i32
  }
  func.func @transform_5(%arg0: i32, %arg1: i32, %arg2: i32) -> (i32, i32, i32, i32) {
    %c0_i32 = arith.constant 0 : i32
    %c0_i32_0 = arith.constant 0 : i32
    return %arg0, %arg1, %arg2, %c0_i32 : i32, i32, i32, i32
  }
}

module attributes {stable_mosaic.version = 11 : i64} {
  func.func @_conv2_tail_kernel(%arg0: i32, %arg1: memref<1x30x512xbf16, #tpu.memory_space<vmem>>, %arg2: memref<1x20x128xbf16, #tpu.memory_space<vmem>>, %arg3: memref<9x128x128xbf16, #tpu.memory_space<vmem>>, %arg4: memref<1x128xf32, #tpu.memory_space<vmem>>, %arg5: memref<128x128xbf16, #tpu.memory_space<vmem>>, %arg6: memref<128x128xbf16, #tpu.memory_space<vmem>>, %arg7: memref<1x128xf32, #tpu.memory_space<vmem>>, %arg8: memref<1x20x128xbf16, #tpu.memory_space<vmem>>) attributes {dimension_semantics = [#tpu.dimension_semantics<parallel>], iteration_bounds = array<i64: 8>, scalar_prefetch = 0 : i64, scratch_operands = 0 : i64, tpu.core_type = #tpu.core_type<tc>, window_params = [{transform_indices = @transform_0, window_bounds = array<i64: 1, 30, 512>}, {transform_indices = @transform_1, window_bounds = array<i64: 1, 20, 128>}, {pipeline_mode = #tpu.pipeline_mode<synchronous>, transform_indices = @transform_2, window_bounds = array<i64: 9, 128, 128>}, {pipeline_mode = #tpu.pipeline_mode<synchronous>, transform_indices = @transform_3, window_bounds = array<i64: 1, 128>}, {pipeline_mode = #tpu.pipeline_mode<synchronous>, transform_indices = @transform_4, window_bounds = array<i64: 128, 128>}, {pipeline_mode = #tpu.pipeline_mode<synchronous>, transform_indices = @transform_5, window_bounds = array<i64: 128, 128>}, {pipeline_mode = #tpu.pipeline_mode<synchronous>, transform_indices = @transform_6, window_bounds = array<i64: 1, 128>}, {transform_indices = @transform_7, window_bounds = array<i64: 1, 20, 128>}]} {
    %c0 = arith.constant 0 : index
    %c0_0 = arith.constant 0 : index
    %c0_1 = arith.constant 0 : index
    %0 = vector.load %arg1[%c0, %c0_0, %c0_1] : memref<1x30x512xbf16, #tpu.memory_space<vmem>>, vector<1x20x128xbf16>
    %1 = vector.shape_cast %0 : vector<1x20x128xbf16> to vector<20x128xbf16>
    %c0_2 = arith.constant 0 : index
    %c0_3 = arith.constant 0 : index
    %c0_4 = arith.constant 0 : index
    %2 = vector.load %arg3[%c0_2, %c0_3, %c0_4] : memref<9x128x128xbf16, #tpu.memory_space<vmem>>, vector<1x128x128xbf16>
    %3 = vector.shape_cast %2 : vector<1x128x128xbf16> to vector<128x128xbf16>
    %cst = arith.constant dense<0.000000e+00> : vector<20x128xf32>
    %4 = tpu.matmul %1, %3, %cst {dimension_numbers = #tpu.dot_dimension_numbers<[1], [0], [0], [1], [0, 0, 1, 1], [], []>} : vector<20x128xbf16>, vector<128x128xbf16>, vector<20x128xf32> -> vector<20x128xf32>
    %c0_5 = arith.constant 0 : index
    %c0_6 = arith.constant 0 : index
    %c128 = arith.constant 128 : index
    %5 = vector.load %arg1[%c0_5, %c0_6, %c128] : memref<1x30x512xbf16, #tpu.memory_space<vmem>>, vector<1x20x128xbf16>
    %6 = vector.shape_cast %5 : vector<1x20x128xbf16> to vector<20x128xbf16>
    %c1 = arith.constant 1 : index
    %c0_7 = arith.constant 0 : index
    %c0_8 = arith.constant 0 : index
    %7 = vector.load %arg3[%c1, %c0_7, %c0_8] : memref<9x128x128xbf16, #tpu.memory_space<vmem>>, vector<1x128x128xbf16>
    %8 = vector.shape_cast %7 : vector<1x128x128xbf16> to vector<128x128xbf16>
    %cst_9 = arith.constant dense<0.000000e+00> : vector<20x128xf32>
    %9 = tpu.matmul %6, %8, %cst_9 {dimension_numbers = #tpu.dot_dimension_numbers<[1], [0], [0], [1], [0, 0, 1, 1], [], []>} : vector<20x128xbf16>, vector<128x128xbf16>, vector<20x128xf32> -> vector<20x128xf32>
    %10 = arith.addf %4, %9 : vector<20x128xf32>
    %c0_10 = arith.constant 0 : index
    %c1_11 = arith.constant 1 : index
    %c0_12 = arith.constant 0 : index
    %11 = vector.load %arg1[%c0_10, %c1_11, %c0_12] : memref<1x30x512xbf16, #tpu.memory_space<vmem>>, vector<1x20x128xbf16>
    %12 = vector.shape_cast %11 : vector<1x20x128xbf16> to vector<20x128xbf16>
    %c2 = arith.constant 2 : index
    %c0_13 = arith.constant 0 : index
    %c0_14 = arith.constant 0 : index
    %13 = vector.load %arg3[%c2, %c0_13, %c0_14] : memref<9x128x128xbf16, #tpu.memory_space<vmem>>, vector<1x128x128xbf16>
    %14 = vector.shape_cast %13 : vector<1x128x128xbf16> to vector<128x128xbf16>
    %cst_15 = arith.constant dense<0.000000e+00> : vector<20x128xf32>
    %15 = tpu.matmul %12, %14, %cst_15 {dimension_numbers = #tpu.dot_dimension_numbers<[1], [0], [0], [1], [0, 0, 1, 1], [], []>} : vector<20x128xbf16>, vector<128x128xbf16>, vector<20x128xf32> -> vector<20x128xf32>
    %16 = arith.addf %10, %15 : vector<20x128xf32>
    %c0_16 = arith.constant 0 : index
    %c0_17 = arith.constant 0 : index
    %c256 = arith.constant 256 : index
    %17 = vector.load %arg1[%c0_16, %c0_17, %c256] : memref<1x30x512xbf16, #tpu.memory_space<vmem>>, vector<1x20x128xbf16>
    %18 = vector.shape_cast %17 : vector<1x20x128xbf16> to vector<20x128xbf16>
    %c3 = arith.constant 3 : index
    %c0_18 = arith.constant 0 : index
    %c0_19 = arith.constant 0 : index
    %19 = vector.load %arg3[%c3, %c0_18, %c0_19] : memref<9x128x128xbf16, #tpu.memory_space<vmem>>, vector<1x128x128xbf16>
    %20 = vector.shape_cast %19 : vector<1x128x128xbf16> to vector<128x128xbf16>
    %cst_20 = arith.constant dense<0.000000e+00> : vector<20x128xf32>
    %21 = tpu.matmul %18, %20, %cst_20 {dimension_numbers = #tpu.dot_dimension_numbers<[1], [0], [0], [1], [0, 0, 1, 1], [], []>} : vector<20x128xbf16>, vector<128x128xbf16>, vector<20x128xf32> -> vector<20x128xf32>
    %22 = arith.addf %16, %21 : vector<20x128xf32>
    %c0_21 = arith.constant 0 : index
    %c0_22 = arith.constant 0 : index
    %c384 = arith.constant 384 : index
    %23 = vector.load %arg1[%c0_21, %c0_22, %c384] : memref<1x30x512xbf16, #tpu.memory_space<vmem>>, vector<1x20x128xbf16>
    %24 = vector.shape_cast %23 : vector<1x20x128xbf16> to vector<20x128xbf16>
    %c4 = arith.constant 4 : index
    %c0_23 = arith.constant 0 : index
    %c0_24 = arith.constant 0 : index
    %25 = vector.load %arg3[%c4, %c0_23, %c0_24] : memref<9x128x128xbf16, #tpu.memory_space<vmem>>, vector<1x128x128xbf16>
    %26 = vector.shape_cast %25 : vector<1x128x128xbf16> to vector<128x128xbf16>
    %cst_25 = arith.constant dense<0.000000e+00> : vector<20x128xf32>
    %27 = tpu.matmul %24, %26, %cst_25 {dimension_numbers = #tpu.dot_dimension_numbers<[1], [0], [0], [1], [0, 0, 1, 1], [], []>} : vector<20x128xbf16>, vector<128x128xbf16>, vector<20x128xf32> -> vector<20x128xf32>
    %28 = arith.addf %22, %27 : vector<20x128xf32>
    %c0_26 = arith.constant 0 : index
    %c1_27 = arith.constant 1 : index
    %c256_28 = arith.constant 256 : index
    %29 = vector.load %arg1[%c0_26, %c1_27, %c256_28] : memref<1x30x512xbf16, #tpu.memory_space<vmem>>, vector<1x20x128xbf16>
    %30 = vector.shape_cast %29 : vector<1x20x128xbf16> to vector<20x128xbf16>
    %c5 = arith.constant 5 : index
    %c0_29 = arith.constant 0 : index
    %c0_30 = arith.constant 0 : index
    %31 = vector.load %arg3[%c5, %c0_29, %c0_30] : memref<9x128x128xbf16, #tpu.memory_space<vmem>>, vector<1x128x128xbf16>
    %32 = vector.shape_cast %31 : vector<1x128x128xbf16> to vector<128x128xbf16>
    %cst_31 = arith.constant dense<0.000000e+00> : vector<20x128xf32>
    %33 = tpu.matmul %30, %32, %cst_31 {dimension_numbers = #tpu.dot_dimension_numbers<[1], [0], [0], [1], [0, 0, 1, 1], [], []>} : vector<20x128xbf16>, vector<128x128xbf16>, vector<20x128xf32> -> vector<20x128xf32>
    %34 = arith.addf %28, %33 : vector<20x128xf32>
    %c0_32 = arith.constant 0 : index
    %c5_33 = arith.constant 5 : index
    %c0_34 = arith.constant 0 : index
    %35 = vector.load %arg1[%c0_32, %c5_33, %c0_34] : memref<1x30x512xbf16, #tpu.memory_space<vmem>>, vector<1x20x128xbf16>
    %36 = vector.shape_cast %35 : vector<1x20x128xbf16> to vector<20x128xbf16>
    %c6 = arith.constant 6 : index
    %c0_35 = arith.constant 0 : index
    %c0_36 = arith.constant 0 : index
    %37 = vector.load %arg3[%c6, %c0_35, %c0_36] : memref<9x128x128xbf16, #tpu.memory_space<vmem>>, vector<1x128x128xbf16>
    %38 = vector.shape_cast %37 : vector<1x128x128xbf16> to vector<128x128xbf16>
    %cst_37 = arith.constant dense<0.000000e+00> : vector<20x128xf32>
    %39 = tpu.matmul %36, %38, %cst_37 {dimension_numbers = #tpu.dot_dimension_numbers<[1], [0], [0], [1], [0, 0, 1, 1], [], []>} : vector<20x128xbf16>, vector<128x128xbf16>, vector<20x128xf32> -> vector<20x128xf32>
    %40 = arith.addf %34, %39 : vector<20x128xf32>
    %c0_38 = arith.constant 0 : index
    %c5_39 = arith.constant 5 : index
    %c128_40 = arith.constant 128 : index
    %41 = vector.load %arg1[%c0_38, %c5_39, %c128_40] : memref<1x30x512xbf16, #tpu.memory_space<vmem>>, vector<1x20x128xbf16>
    %42 = vector.shape_cast %41 : vector<1x20x128xbf16> to vector<20x128xbf16>
    %c7 = arith.constant 7 : index
    %c0_41 = arith.constant 0 : index
    %c0_42 = arith.constant 0 : index
    %43 = vector.load %arg3[%c7, %c0_41, %c0_42] : memref<9x128x128xbf16, #tpu.memory_space<vmem>>, vector<1x128x128xbf16>
    %44 = vector.shape_cast %43 : vector<1x128x128xbf16> to vector<128x128xbf16>
    %cst_43 = arith.constant dense<0.000000e+00> : vector<20x128xf32>
    %45 = tpu.matmul %42, %44, %cst_43 {dimension_numbers = #tpu.dot_dimension_numbers<[1], [0], [0], [1], [0, 0, 1, 1], [], []>} : vector<20x128xbf16>, vector<128x128xbf16>, vector<20x128xf32> -> vector<20x128xf32>
    %46 = arith.addf %40, %45 : vector<20x128xf32>
    %c0_44 = arith.constant 0 : index
    %c6_45 = arith.constant 6 : index
    %c0_46 = arith.constant 0 : index
    %47 = vector.load %arg1[%c0_44, %c6_45, %c0_46] : memref<1x30x512xbf16, #tpu.memory_space<vmem>>, vector<1x20x128xbf16>
    %48 = vector.shape_cast %47 : vector<1x20x128xbf16> to vector<20x128xbf16>
    %c8 = arith.constant 8 : index
    %c0_47 = arith.constant 0 : index
    %c0_48 = arith.constant 0 : index
    %49 = vector.load %arg3[%c8, %c0_47, %c0_48] : memref<9x128x128xbf16, #tpu.memory_space<vmem>>, vector<1x128x128xbf16>
    %50 = vector.shape_cast %49 : vector<1x128x128xbf16> to vector<128x128xbf16>
    %cst_49 = arith.constant dense<0.000000e+00> : vector<20x128xf32>
    %51 = tpu.matmul %48, %50, %cst_49 {dimension_numbers = #tpu.dot_dimension_numbers<[1], [0], [0], [1], [0, 0, 1, 1], [], []>} : vector<20x128xbf16>, vector<128x128xbf16>, vector<20x128xf32> -> vector<20x128xf32>
    %52 = arith.addf %46, %51 : vector<20x128xf32>
    %c0_50 = arith.constant 0 : index
    %c0_51 = arith.constant 0 : index
    %53 = vector.load %arg4[%c0_50, %c0_51] : memref<1x128xf32, #tpu.memory_space<vmem>>, vector<1x128xf32>
    %54 = vector.broadcast %53 : vector<1x128xf32> to vector<20x128xf32>
    %55 = arith.addf %52, %54 : vector<20x128xf32>
    %cst_52 = arith.constant 0.000000e+00 : f32
    %56 = vector.broadcast %cst_52 : f32 to vector<20x128xf32>
    %57 = arith.maximumf %55, %56 : vector<20x128xf32>
    %58 = arith.truncf %57 : vector<20x128xf32> to vector<20x128xbf16>
    %c0_53 = arith.constant 0 : index
    %c0_54 = arith.constant 0 : index
    %59 = vector.load %arg5[%c0_53, %c0_54] : memref<128x128xbf16, #tpu.memory_space<vmem>>, vector<128x128xbf16>
    %cst_55 = arith.constant dense<0.000000e+00> : vector<20x128xf32>
    %60 = tpu.matmul %58, %59, %cst_55 {dimension_numbers = #tpu.dot_dimension_numbers<[1], [0], [0], [1], [0, 0, 1, 1], [], []>} : vector<20x128xbf16>, vector<128x128xbf16>, vector<20x128xf32> -> vector<20x128xf32>
    %c0_56 = arith.constant 0 : index
    %c0_57 = arith.constant 0 : index
    %c0_58 = arith.constant 0 : index
    %61 = vector.load %arg2[%c0_56, %c0_57, %c0_58] : memref<1x20x128xbf16, #tpu.memory_space<vmem>>, vector<1x20x128xbf16>
    %62 = vector.shape_cast %61 : vector<1x20x128xbf16> to vector<20x128xbf16>
    %c0_59 = arith.constant 0 : index
    %c0_60 = arith.constant 0 : index
    %63 = vector.load %arg6[%c0_59, %c0_60] : memref<128x128xbf16, #tpu.memory_space<vmem>>, vector<128x128xbf16>
    %cst_61 = arith.constant dense<0.000000e+00> : vector<20x128xf32>
    %64 = tpu.matmul %62, %63, %cst_61 {dimension_numbers = #tpu.dot_dimension_numbers<[1], [0], [0], [1], [0, 0, 1, 1], [], []>} : vector<20x128xbf16>, vector<128x128xbf16>, vector<20x128xf32> -> vector<20x128xf32>
    %65 = arith.addf %60, %64 : vector<20x128xf32>
    %c0_62 = arith.constant 0 : index
    %c0_63 = arith.constant 0 : index
    %66 = vector.load %arg7[%c0_62, %c0_63] : memref<1x128xf32, #tpu.memory_space<vmem>>, vector<1x128xf32>
    %67 = vector.broadcast %66 : vector<1x128xf32> to vector<20x128xf32>
    %68 = arith.addf %65, %67 : vector<20x128xf32>
    %cst_64 = arith.constant 0.000000e+00 : f32
    %69 = vector.broadcast %cst_64 : f32 to vector<20x128xf32>
    %70 = arith.maximumf %68, %69 : vector<20x128xf32>
    %71 = arith.truncf %70 : vector<20x128xf32> to vector<20x128xbf16>
    %c0_65 = arith.constant 0 : index
    %c0_66 = arith.constant 0 : index
    %c0_67 = arith.constant 0 : index
    %72 = vector.load %arg8[%c0_65, %c0_66, %c0_67] : memref<1x20x128xbf16, #tpu.memory_space<vmem>>, vector<1x20x128xbf16>
    %73 = vector.shape_cast %72 : vector<1x20x128xbf16> to vector<20x128xbf16>
    %74 = vector.shape_cast %71 : vector<20x128xbf16> to vector<1x20x128xbf16>
    tpu.vector_store %arg8[%c0_65, %c0_66, %c0_67], %74 {strides = array<i32>} : memref<1x20x128xbf16, #tpu.memory_space<vmem>>, vector<1x20x128xbf16>,
    return
  }
  func.func @transform_0(%arg0: i32) -> (i32, i32, i32) {
    %c0_i32 = arith.constant 0 : i32
    %c0_i32_0 = arith.constant 0 : i32
    %c0_i32_1 = arith.constant 0 : i32
    return %arg0, %c0_i32, %c0_i32_0 : i32, i32, i32
  }
  func.func @transform_1(%arg0: i32) -> (i32, i32, i32) {
    %c0_i32 = arith.constant 0 : i32
    %c0_i32_0 = arith.constant 0 : i32
    %c0_i32_1 = arith.constant 0 : i32
    return %arg0, %c0_i32, %c0_i32_0 : i32, i32, i32
  }
  func.func @transform_2(%arg0: i32) -> (i32, i32, i32) {
    %c0_i32 = arith.constant 0 : i32
    %c0_i32_0 = arith.constant 0 : i32
    %c0_i32_1 = arith.constant 0 : i32
    %c0_i32_2 = arith.constant 0 : i32
    return %c0_i32, %c0_i32_0, %c0_i32_1 : i32, i32, i32
  }
  func.func @transform_3(%arg0: i32) -> (i32, i32) {
    %c0_i32 = arith.constant 0 : i32
    %c0_i32_0 = arith.constant 0 : i32
    %c0_i32_1 = arith.constant 0 : i32
    return %c0_i32, %c0_i32_0 : i32, i32
  }
  func.func @transform_4(%arg0: i32) -> (i32, i32) {
    %c0_i32 = arith.constant 0 : i32
    %c0_i32_0 = arith.constant 0 : i32
    %c0_i32_1 = arith.constant 0 : i32
    return %c0_i32, %c0_i32_0 : i32, i32
  }
  func.func @transform_5(%arg0: i32) -> (i32, i32) {
    %c0_i32 = arith.constant 0 : i32
    %c0_i32_0 = arith.constant 0 : i32
    %c0_i32_1 = arith.constant 0 : i32
    return %c0_i32, %c0_i32_0 : i32, i32
  }
  func.func @transform_6(%arg0: i32) -> (i32, i32) {
    %c0_i32 = arith.constant 0 : i32
    %c0_i32_0 = arith.constant 0 : i32
    %c0_i32_1 = arith.constant 0 : i32
    return %c0_i32, %c0_i32_0 : i32, i32
  }
  func.func @transform_7(%arg0: i32) -> (i32, i32, i32) {
    %c0_i32 = arith.constant 0 : i32
    %c0_i32_0 = arith.constant 0 : i32
    %c0_i32_1 = arith.constant 0 : i32
    return %arg0, %c0_i32, %c0_i32_0 : i32, i32, i32
  }
}

</mosaic_0001>

<llo_original>
// kernel: res_block_forward.2
$region0: #{res_block_forward.2}
  #allocation0 [shape = 'u32[]', space=smem, size = 0x4, offset = 0x4, fixed_abs, tag = 'smem constant byte address 0x4 - core index']
  #allocation1 [shape = 'u32[144,128]{1,0:T(1,128)}', space=vmem, size = 0x12000, scoped, tag = 'internal scratch']
  %s0 = inlined_call_operand.vmem [shape: bf16[2,6,64,128], index: 0, kind: input, shape index: {}, may-alias: {0,1,2}]
  %s1 = inlined_call_operand.vmem [shape: bf16[2,6,64,128], index: 1, kind: input, shape index: {}, may-alias: {0,1,2}]
  %s2 = inlined_call_operand.vmem [shape: bf16[2,6,64,128], index: 2, kind: input, shape index: {}, may-alias: {0,1,2}]
  %s3 = inlined_call_operand.vmem [shape: bf16[3,128,128], index: 3, kind: input, shape index: {}]
  %s4 = inlined_call_operand.vmem [shape: f32[1,128], index: 4, kind: input, shape index: {}]
  %s5 = inlined_call_operand.vmem [shape: bf16[2,4,64,128], index: 5, kind: output, shape index: {}]
  %s6 = sld [smem:[#allocation0]]
  $region53: #{res_block_forward.2} parent=0
    _
  %s8 = ssub.s32 1, %s6
  %s9 = scalar_select 0, %s8, %s6
  loop: start=0, step=1, limit=10
  $region2: #{res_block_forward.2} parent=0 // loop_pre_header
    _
  $region3: #{res_block_forward.2} parent=0 // loop_header
    %s11 = sphi 0, %s15
    %p12 = scmp.ge.s32.totalorder %s11, 10
    %s18 = sphi 0, %s37
    %s19 = sphi 0, %s33
    %s20 = sphi 0, %s29
    %s21 = sphi 0, %s18
    %s22 = sphi 0, %s19
    %s23 = sphi 0, %s20
    %s24 = sphi 0, %s21
    %s25 = sphi 0, %s22
    %s26 = sphi 0, %s23
    %s44 = sphi 0, %s46
    %s47 = sphi 0, %s44
    %s48 = sphi 0, %s47
    %s64 = sphi 0, %s48
    %s76 = sphi 0, %s78
    %s79 = sphi 0, %s76
    %s80 = sphi 0, %s79
    %s96 = sphi 0, %s80
    %s108 = sphi 0, %s110
    %s111 = sphi 0, %s108
    %s112 = sphi 0, %s111
    %s128 = sphi 0, %s112
    %s132 = sphi 0, %s132
    %s134 = sphi 0, %s132
    %s135 = sphi 0, %s134
    %s149 = sphi 0, %s135
    %s153 = sphi 0, %s153
    %s155 = sphi 0, %s153
    %s156 = sphi 0, %s155
    %s170 = sphi 0, %s156
    %s180 = sphi 0, %s182
    %s183 = sphi 0, %s180
    %s184 = sphi 0, %s183
    %s200 = sphi 0, %s184
  $region4: #{res_block_forward.2} parent=0 // loop_header_branch
    %14 = sbr.rel (%p12) target = $region8
  $region5: #{res_block_forward.2} parent=0 // loop_body
    %s16 = ssub.s32 %s11, 1
    %s17 = ssub.s32 %s11, 2
    %s27 = sadd.s32 1, %s20
    %p28 = scmp.ge.s32.totalorder %s27, 1
    %s29 = scalar_select %p28, 0, %s27
    %s30 = sadd.s32 1, %s19
    %s31 = scalar_select %p28, %s30, %s19
    %p32 = scmp.ge.s32.totalorder %s31, 4
    %s33 = scalar_select %p32, 0, %s31
    %s34 = sadd.s32 1, %s18
    %s35 = scalar_select %p32, %s34, %s18
    %p36 = scmp.ge.s32.totalorder %s35, 2
    %s37 = scalar_select %p36, 0, %s35
    %s38 = ssub.s32 %s18, %s37
    %s39 = ssub.s32 %s19, %s33
    %s40 = sor.u32 %s38, %s39
    %s41 = ssub.s32 %s20, %s29
    %s42 = sor.u32 %s40, %s41
    %p43 = scmp.eq.s32.totalorder %s42, 0
    %s45 = sadd.s32 %s44, 1
    %s46 = scalar_select %p43, %s44, %s45
    %p49 = pneg %p43
    %p50 = scmp.eq.s32.totalorder %s11, 7
    %p51 = por %p49, %p50
    %p52 = scmp.ne.s32.totalorder %s44, %s47
    %p53 = scmp.eq.s32.totalorder %s11, 0
    %p54 = por %p52, %p53
    %p55 = scmp.ne.s32.totalorder %s44, %s47
    %p56 = scmp.eq.s32.totalorder %s16, 7
    %p57 = por %p55, %p56
    %p58 = scmp.ne.s32.totalorder %s47, %s48
    %p59 = scmp.eq.s32.totalorder %s16, 0
    %p60 = por %p58, %p59
    %p61 = scmp.ne.s32.totalorder %s47, %s48
    %p62 = scmp.eq.s32.totalorder %s17, 7
    %p63 = por %p61, %p62
    %p65 = scmp.ne.s32.totalorder %s48, %s64
    %p66 = scmp.eq.s32.totalorder %s17, 0
    %p67 = por %p65, %p66
    %s68 = sadd.s32 %s19, 1
    %s69 = sadd.s32 %s33, 1
    %s70 = ssub.s32 %s18, %s37
    %s71 = ssub.s32 %s68, %s69
    %s72 = sor.u32 %s70, %s71
    %s73 = ssub.s32 %s20, %s29
    %s74 = sor.u32 %s72, %s73
    %p75 = scmp.eq.s32.totalorder %s74, 0
    %s77 = sadd.s32 %s76, 1
    %s78 = scalar_select %p75, %s76, %s77
    %p81 = pneg %p75
    %p82 = scmp.eq.s32.totalorder %s11, 7
    %p83 = por %p81, %p82
    %p84 = scmp.ne.s32.totalorder %s76, %s79
    %p85 = scmp.eq.s32.totalorder %s11, 0
    %p86 = por %p84, %p85
    %p87 = scmp.ne.s32.totalorder %s76, %s79
    %p88 = scmp.eq.s32.totalorder %s16, 7
    %p89 = por %p87, %p88
    %p90 = scmp.ne.s32.totalorder %s79, %s80
    %p91 = scmp.eq.s32.totalorder %s16, 0
    %p92 = por %p90, %p91
    %p93 = scmp.ne.s32.totalorder %s79, %s80
    %p94 = scmp.eq.s32.totalorder %s17, 7
    %p95 = por %p93, %p94
    %p97 = scmp.ne.s32.totalorder %s80, %s96
    %p98 = scmp.eq.s32.totalorder %s17, 0
    %p99 = por %p97, %p98
    %s100 = sadd.s32 %s19, 2
    %s101 = sadd.s32 %s33, 2
    %s102 = ssub.s32 %s18, %s37
    %s103 = ssub.s32 %s100, %s101
    %s104 = sor.u32 %s102, %s103
    %s105 = ssub.s32 %s20, %s29
    %s106 = sor.u32 %s104, %s105
    %p107 = scmp.eq.s32.totalorder %s106, 0
    %s109 = sadd.s32 %s108, 1
    %s110 = scalar_select %p107, %s108, %s109
    %p113 = pneg %p107
    %p114 = scmp.eq.s32.totalorder %s11, 7
    %p115 = por %p113, %p114
    %p116 = scmp.ne.s32.totalorder %s108, %s111
    %p117 = scmp.eq.s32.totalorder %s11, 0
    %p118 = por %p116, %p117
    %p119 = scmp.ne.s32.totalorder %s108, %s111
    %p120 = scmp.eq.s32.totalorder %s16, 7
    %p121 = por %p119, %p120
    %p122 = scmp.ne.s32.totalorder %s111, %s112
    %p123 = scmp.eq.s32.totalorder %s16, 0
    %p124 = por %p122, %p123
    %p125 = scmp.ne.s32.totalorder %s111, %s112
    %p126 = scmp.eq.s32.totalorder %s17, 7
    %p127 = por %p125, %p126
    %p129 = scmp.ne.s32.totalorder %s112, %s128
    %p130 = scmp.eq.s32.totalorder %s17, 0
    %p131 = por %p129, %p130
    %s133 = sadd.s32 %s132, 1
    %p136 = scmp.eq.s32.totalorder %s11, 7
    %p137 = scmp.ne.s32.totalorder %s132, %s134
    %p138 = scmp.eq.s32.totalorder %s11, 0
    %p139 = por %p137, %p138
    %p140 = scmp.ne.s32.totalorder %s132, %s134
    %p141 = scmp.eq.s32.totalorder %s16, 7
    %p142 = por %p140, %p141
    %p143 = scmp.ne.s32.totalorder %s134, %s135
    %p144 = scmp.eq.s32.totalorder %s16, 0
    %p145 = por %p143, %p144
    %p146 = scmp.ne.s32.totalorder %s134, %s135
    %p147 = scmp.eq.s32.totalorder %s17, 7
    %p148 = por %p146, %p147
    %p150 = scmp.ne.s32.totalorder %s135, %s149
    %p151 = scmp.eq.s32.totalorder %s17, 0
    %p152 = por %p150, %p151
    %s154 = sadd.s32 %s153, 1
    %p157 = scmp.eq.s32.totalorder %s11, 7
    %p158 = scmp.ne.s32.totalorder %s153, %s155
    %p159 = scmp.eq.s32.totalorder %s11, 0
    %p160 = por %p158, %p159
    %p161 = scmp.ne.s32.totalorder %s153, %s155
    %p162 = scmp.eq.s32.totalorder %s16, 7
    %p163 = por %p161, %p162
    %p164 = scmp.ne.s32.totalorder %s155, %s156
    %p165 = scmp.eq.s32.totalorder %s16, 0
    %p166 = por %p164, %p165
    %p167 = scmp.ne.s32.totalorder %s155, %s156
    %p168 = scmp.eq.s32.totalorder %s17, 7
    %p169 = por %p167, %p168
    %p171 = scmp.ne.s32.totalorder %s156, %s170
    %p172 = scmp.eq.s32.totalorder %s17, 0
    %p173 = por %p171, %p172
    %s174 = ssub.s32 %s18, %s37
    %s175 = ssub.s32 %s19, %s33
    %s176 = sor.u32 %s174, %s175
    %s177 = ssub.s32 %s20, %s29
    %s178 = sor.u32 %s176, %s177
    %p179 = scmp.eq.s32.totalorder %s178, 0
    %s181 = sadd.s32 %s180, 1
    %s182 = scalar_select %p179, %s180, %s181
    %p185 = pneg %p179
    %p186 = scmp.eq.s32.totalorder %s11, 7
    %p187 = por %p185, %p186
    %p188 = scmp.ne.s32.totalorder %s180, %s183
    %p189 = scmp.eq.s32.totalorder %s11, 0
    %p190 = por %p188, %p189
    %p191 = scmp.ne.s32.totalorder %s180, %s183
    %p192 = scmp.eq.s32.totalorder %s16, 7
    %p193 = por %p191, %p192
    %p194 = scmp.ne.s32.totalorder %s183, %s184
    %p195 = scmp.eq.s32.totalorder %s16, 0
    %p196 = por %p194, %p195
    %p197 = scmp.ne.s32.totalorder %s183, %s184
    %p198 = scmp.eq.s32.totalorder %s17, 7
    %p199 = por %p197, %p198
    %p201 = scmp.ne.s32.totalorder %s184, %s200
    %p202 = scmp.eq.s32.totalorder %s17, 0
    %p203 = por %p201, %p202
    %p204 = scmp.le.s32.totalorder 1, %s11
    %p205 = scmp.lt.s32.totalorder %s11, 9
    %p206 = pnand %p204, %p205
    %p207 = pneg %p206
    // Predicated region
    $region9: #{res_block_forward.2} parent=5 // pred_check
      _
    $region10: #{res_block_forward.2} parent=5 // pred_check_branch
      %209 = sbr.rel (%p206) target = $region12
    $region11: #{res_block_forward.2} parent=5 // pred_region
      %s210 = ssub.s32 %s11, 1
      // Predicated region
      $region13: #{res_block_forward.2} parent=11 // pred_check
        %p211 = pneg %p145
      $region14: #{res_block_forward.2} parent=11 // pred_check_branch
        %213 = sbr.rel (%p211) target = $region16
      $region15: #{res_block_forward.2} parent=11 // pred_region
        _
      $region16: #{res_block_forward.2} parent=11 // pred_fallthru
        _
      // Predicated region
      $region17: #{res_block_forward.2} parent=11 // pred_check
        %p214 = pneg %p166
      $region18: #{res_block_forward.2} parent=11 // pred_check_branch
        %216 = sbr.rel (%p214) target = $region20
      $region19: #{res_block_forward.2} parent=11 // pred_region
        _
      $region20: #{res_block_forward.2} parent=11 // pred_fallthru
        _
    $region12: #{res_block_forward.2} parent=5 // pred_fallthru
      _
    %p217 = scmp.lt.s32.totalorder %s11, 8
    // Predicated region
    $region21: #{res_block_forward.2} parent=5 // pred_check
      %p218 = pneg %p217
    $region22: #{res_block_forward.2} parent=5 // pred_check_branch
      %220 = sbr.rel (%p218) target = $region24
    $region23: #{res_block_forward.2} parent=5 // pred_region
      // Predicated region
      $region25: #{res_block_forward.2} parent=23 // pred_check
        %p221 = pneg %p54
      $region26: #{res_block_forward.2} parent=23 // pred_check_branch
        %223 = sbr.rel (%p221) target = $region28
      $region27: #{res_block_forward.2} parent=23 // pred_region
        %s224 = smul.u32 8, %s20
        %p225 = scmp.lt.s32.totalorder %s18, 1
        %s226 = scalar_select %p225, %s18, 1
        %p227 = scmp.lt.s32.totalorder %s19, 5
        %s228 = scalar_select %p227, %s19, 5
        %p229 = scmp.lt.s32.totalorder %s224, 7
        %s230 = scalar_select %p229, %s224, 7
        %s231 = smul.addr %s228, 8
        %s232 = sadd.s32 %s230, %s231
        %s233 = smul.addr %s226, 48
        %s234 = sadd.s32 %s232, %s233
        %s235 = smul.addr %s234, 4
        %s236 = scalar_lea.vmem %s0, %s235
        %s237 = smul.u32 8, %s20
      $region28: #{res_block_forward.2} parent=23 // pred_fallthru
        _
      // Predicated region
      $region29: #{res_block_forward.2} parent=23 // pred_check
        %p238 = pneg %p86
      $region30: #{res_block_forward.2} parent=23 // pred_check_branch
        %240 = sbr.rel (%p238) target = $region32
      $region31: #{res_block_forward.2} parent=23 // pred_region
        %s241 = sadd.s32 %s19, 1
        %s242 = smul.u32 8, %s20
        %p243 = scmp.lt.s32.totalorder %s18, 1
        %s244 = scalar_select %p243, %s18, 1
        %p245 = scmp.lt.s32.totalorder %s241, 5
        %s246 = scalar_select %p245, %s241, 5
        %p247 = scmp.lt.s32.totalorder %s242, 7
        %s248 = scalar_select %p247, %s242, 7
        %s249 = smul.addr %s246, 8
        %s250 = sadd.s32 %s248, %s249
        %s251 = smul.addr %s244, 48
        %s252 = sadd.s32 %s250, %s251
        %s253 = smul.addr %s252, 4
        %s254 = scalar_lea.vmem %s1, %s253
        %s255 = sadd.s32 %s19, 1
        %s256 = smul.u32 8, %s20
      $region32: #{res_block_forward.2} parent=23 // pred_fallthru
        _
      // Predicated region
      $region33: #{res_block_forward.2} parent=23 // pred_check
        %p257 = pneg %p118
      $region34: #{res_block_forward.2} parent=23 // pred_check_branch
        %259 = sbr.rel (%p257) target = $region36
      $region35: #{res_block_forward.2} parent=23 // pred_region
        %s260 = sadd.s32 %s19, 2
        %s261 = smul.u32 8, %s20
        %p262 = scmp.lt.s32.totalorder %s18, 1
        %s263 = scalar_select %p262, %s18, 1
        %p264 = scmp.lt.s32.totalorder %s260, 5
        %s265 = scalar_select %p264, %s260, 5
        %p266 = scmp.lt.s32.totalorder %s261, 7
        %s267 = scalar_select %p266, %s261, 7
        %s268 = smul.addr %s265, 8
        %s269 = sadd.s32 %s267, %s268
        %s270 = smul.addr %s263, 48
        %s271 = sadd.s32 %s269, %s270
        %s272 = smul.addr %s271, 4
        %s273 = scalar_lea.vmem %s2, %s272
        %s274 = sadd.s32 %s19, 2
        %s275 = smul.u32 8, %s20
      $region36: #{res_block_forward.2} parent=23 // pred_fallthru
        _
    $region24: #{res_block_forward.2} parent=5 // pred_fallthru
      _
    %p276 = scmp.le.s32.totalorder 1, %s11
    %p277 = scmp.lt.s32.totalorder %s11, 9
    %p278 = pnand %p276, %p277
    %p279 = pneg %p278
    // Predicated region
    $region37: #{res_block_forward.2} parent=5 // pred_check
      _
    $region38: #{res_block_forward.2} parent=5 // pred_check_branch
      %281 = sbr.rel (%p278) target = $region40
    $region39: #{res_block_forward.2} parent=5 // pred_region
      %s282 = ssub.s32 %s11, 1
      %s283 = smul.u32 8, %s23
      %p284 = scmp.lt.s32.totalorder %s21, 1
      %s285 = scalar_select %p284, %s21, 1
      %p286 = scmp.lt.s32.totalorder %s22, 5
      %s287 = scalar_select %p286, %s22, 5
      %p288 = scmp.lt.s32.totalorder %s283, 7
      %s289 = scalar_select %p288, %s283, 7
      %s290 = smul.addr %s287, 8
      %s291 = sadd.s32 %s289, %s290
      %s292 = smul.addr %s285, 48
      %s293 = sadd.s32 %s291, %s292
      %s294 = smul.addr %s293, 4
      %s295 = scalar_lea.vmem %s0, %s294
      %p296 = pneg %p60
      %p297 = pneg %p57
      %s298 = sadd.s32 %s22, 1
      %s299 = smul.u32 8, %s23
      %p300 = scmp.lt.s32.totalorder %s21, 1
      %s301 = scalar_select %p300, %s21, 1
      %p302 = scmp.lt.s32.totalorder %s298, 5
      %s303 = scalar_select %p302, %s298, 5
      %p304 = scmp.lt.s32.totalorder %s299, 7
      %s305 = scalar_select %p304, %s299, 7
      %s306 = smul.addr %s303, 8
      %s307 = sadd.s32 %s305, %s306
      %s308 = smul.addr %s301, 48
      %s309 = sadd.s32 %s307, %s308
      %s310 = smul.addr %s309, 4
      %s311 = scalar_lea.vmem %s1, %s310
      %p312 = pneg %p92
      %p313 = pneg %p89
      %s314 = sadd.s32 %s22, 2
      %s315 = smul.u32 8, %s23
      %p316 = scmp.lt.s32.totalorder %s21, 1
      %s317 = scalar_select %p316, %s21, 1
      %p318 = scmp.lt.s32.totalorder %s314, 5
      %s319 = scalar_select %p318, %s314, 5
      %p320 = scmp.lt.s32.totalorder %s315, 7
      %s321 = scalar_select %p320, %s315, 7
      %s322 = smul.addr %s319, 8
      %s323 = sadd.s32 %s321, %s322
      %s324 = smul.addr %s317, 48
      %s325 = sadd.s32 %s323, %s324
      %s326 = smul.addr %s325, 4
      %s327 = scalar_lea.vmem %s2, %s326
      %p328 = pneg %p124
      %p329 = pneg %p121
      %p330 = pneg %p145
      %p331 = pneg %p142
      %p332 = pneg %p166
      %p333 = pneg %p163
      %p334 = pneg %p196
      %p335 = pneg %p193
      %s336 = smul.u32 8, %s23
      %p337 = scmp.lt.s32.totalorder %s21, 1
      %s338 = scalar_select %p337, %s21, 1
      %p339 = scmp.lt.s32.totalorder %s22, 3
      %s340 = scalar_select %p339, %s22, 3
      %p341 = scmp.lt.s32.totalorder %s336, 7
      %s342 = scalar_select %p341, %s336, 7
      %s343 = smul.addr %s340, 8
      %s344 = sadd.s32 %s342, %s343
      %s345 = smul.addr %s338, 32
      %s346 = sadd.s32 %s344, %s345
      %s347 = smul.addr %s346, 4
      %s348 = scalar_lea.vmem %s5, %s347
      %s349 = smul.u32 8, %s23
      %p350 = scmp.lt.s32.totalorder %s21, 1
      %s351 = scalar_select %p350, %s21, 1
      %p352 = scmp.lt.s32.totalorder %s22, 5
      %s353 = scalar_select %p352, %s22, 5
      %p354 = scmp.lt.s32.totalorder %s349, 7
      %s355 = scalar_select %p354, %s349, 7
      %s356 = smul.addr %s353, 8
      %s357 = sadd.s32 %s355, %s356
      %s358 = smul.addr %s351, 48
      %s359 = sadd.s32 %s357, %s358
      %s360 = smul.addr %s359, 4
      %s361 = scalar_lea.vmem %s0, %s360
      %s362 = smul.u32 8, %s23
      %s363 = sadd.s32 %s22, 1
      %s364 = smul.u32 8, %s23
      %p365 = scmp.lt.s32.totalorder %s21, 1
      %s366 = scalar_select %p365, %s21, 1
      %p367 = scmp.lt.s32.totalorder %s363, 5
      %s368 = scalar_select %p367, %s363, 5
      %p369 = scmp.lt.s32.totalorder %s364, 7
      %s370 = scalar_select %p369, %s364, 7
      %s371 = smul.addr %s368, 8
      %s372 = sadd.s32 %s370, %s371
      %s373 = smul.addr %s366, 48
      %s374 = sadd.s32 %s372, %s373
      %s375 = smul.addr %s374, 4
      %s376 = scalar_lea.vmem %s1, %s375
      %s377 = sadd.s32 %s22, 1
      %s378 = smul.u32 8, %s23
      %s379 = sadd.s32 %s22, 2
      %s380 = smul.u32 8, %s23
      %p381 = scmp.lt.s32.totalorder %s21, 1
      %s382 = scalar_select %p381, %s21, 1
      %p383 = scmp.lt.s32.totalorder %s379, 5
      %s384 = scalar_select %p383, %s379, 5
      %p385 = scmp.lt.s32.totalorder %s380, 7
      %s386 = scalar_select %p385, %s380, 7
      %s387 = smul.addr %s384, 8
      %s388 = sadd.s32 %s386, %s387
      %s389 = smul.addr %s382, 48
      %s390 = sadd.s32 %s388, %s389
      %s391 = smul.addr %s390, 4
      %s392 = scalar_lea.vmem %s2, %s391
      %s393 = sadd.s32 %s22, 2
      %s394 = smul.u32 8, %s23
      %s395 = smul.u32 8, %s23
      %p396 = scmp.lt.s32.totalorder %s21, 1
      %s397 = scalar_select %p396, %s21, 1
      %p398 = scmp.lt.s32.totalorder %s22, 3
      %s399 = scalar_select %p398, %s22, 3
      %p400 = scmp.lt.s32.totalorder %s395, 7
      %s401 = scalar_select %p400, %s395, 7
      %s402 = smul.addr %s399, 8
      %s403 = sadd.s32 %s401, %s402
      %s404 = smul.addr %s397, 32
      %s405 = sadd.s32 %s403, %s404
      %s406 = smul.addr %s405, 4
      %s407 = scalar_lea.vmem %s5, %s406
      %s408 = smul.u32 8, %s23
      %v410 = vld [vmem:[%s361] sm:$0xf]
      %v411 = vld [vmem:[%s361 + $0x4] sm:$0xf]
      %v412 = vld [vmem:[%s361 + $0x8] sm:$0xf]
      %v413 = vld [vmem:[%s361 + $0xc] sm:$0xf]
      %v414 = vld [vmem:[%s361 + $0x10] sm:$0xf]
      %v415 = vld [vmem:[%s361 + $0x14] sm:$0xf]
      %v416 = vld [vmem:[%s361 + $0x18] sm:$0xf]
      %v417 = vld [vmem:[%s361 + $0x1c] sm:$0xf]
      %v418 = vld [vmem:[%s3] sm:$0xf]
      %v419 = vld [vmem:[%s3 + $0x4] sm:$0xf]
      %v420 = vld [vmem:[%s3 + $0x8] sm:$0xf]
      %v421 = vld [vmem:[%s3 + $0xc] sm:$0xf]
      %v422 = vld [vmem:[%s3 + $0x10] sm:$0xf]
      %v423 = vld [vmem:[%s3 + $0x14] sm:$0xf]
      %v424 = vld [vmem:[%s3 + $0x18] sm:$0xf]
      %v425 = vld [vmem:[%s3 + $0x1c] sm:$0xf]
      %v426 = vld [vmem:[%s3 + $0x20] sm:$0xf]
      %v427 = vld [vmem:[%s3 + $0x24] sm:$0xf]
      %v428 = vld [vmem:[%s3 + $0x28] sm:$0xf]
      %v429 = vld [vmem:[%s3 + $0x2c] sm:$0xf]
      %v430 = vld [vmem:[%s3 + $0x30] sm:$0xf]
      %v431 = vld [vmem:[%s3 + $0x34] sm:$0xf]
      %v432 = vld [vmem:[%s3 + $0x38] sm:$0xf]
      %v433 = vld [vmem:[%s3 + $0x3c] sm:$0xf]
      %v434 = vld [vmem:[%s376] sm:$0xf]
      %v435 = vld [vmem:[%s376 + $0x4] sm:$0xf]
      %v436 = vld [vmem:[%s376 + $0x8] sm:$0xf]
      %v437 = vld [vmem:[%s376 + $0xc] sm:$0xf]
      %v438 = vld [vmem:[%s376 + $0x10] sm:$0xf]
      %v439 = vld [vmem:[%s376 + $0x14] sm:$0xf]
      %v440 = vld [vmem:[%s376 + $0x18] sm:$0xf]
      %v441 = vld [vmem:[%s376 + $0x1c] sm:$0xf]
      %s442 = scalar_lea.vmem %s3, 64
      %v443 = vld [vmem:[%s442] sm:$0xf]
      %v444 = vld [vmem:[%s442 + $0x4] sm:$0xf]
      %v445 = vld [vmem:[%s442 + $0x8] sm:$0xf]
      %v446 = vld [vmem:[%s442 + $0xc] sm:$0xf]
      %v447 = vld [vmem:[%s442 + $0x10] sm:$0xf]
      %v448 = vld [vmem:[%s442 + $0x14] sm:$0xf]
      %v449 = vld [vmem:[%s442 + $0x18] sm:$0xf]
      %v450 = vld [vmem:[%s442 + $0x1c] sm:$0xf]
      %v451 = vld [vmem:[%s442 + $0x20] sm:$0xf]
      %v452 = vld [vmem:[%s442 + $0x24] sm:$0xf]
      %v453 = vld [vmem:[%s442 + $0x28] sm:$0xf]
      %v454 = vld [vmem:[%s442 + $0x2c] sm:$0xf]
      %v455 = vld [vmem:[%s442 + $0x30] sm:$0xf]
      %v456 = vld [vmem:[%s442 + $0x34] sm:$0xf]
      %v457 = vld [vmem:[%s442 + $0x38] sm:$0xf]
      %v458 = vld [vmem:[%s442 + $0x3c] sm:$0xf]
      %v467 = vunpack.c.l.b16 %v434
      %v468 = vunpack.c.l.b16 %v435
      %v469 = vunpack.c.l.b16 %v436
      %v470 = vunpack.c.l.b16 %v437
      %v471 = vunpack.c.l.b16 %v438
      %v472 = vunpack.c.l.b16 %v439
      %v473 = vunpack.c.l.b16 %v440
      %v474 = vunpack.c.l.b16 %v441
      %v475 = vpack.c.b16 %v468, %v467
      %v476 = vpack.c.b16 %v470, %v469
      %v477 = vpack.c.b16 %v472, %v471
      %v478 = vpack.c.b16 %v474, %v473
      %v499 = vunpack.c.l.b16 %v443
      %v500 = vunpack.c.l.b16 %v444
      %v501 = vunpack.c.l.b16 %v445
      %v502 = vunpack.c.l.b16 %v446
      %v503 = vunpack.c.l.b16 %v447
      %v504 = vunpack.c.l.b16 %v448
      %v505 = vunpack.c.l.b16 %v449
      %v506 = vunpack.c.l.b16 %v450
      %v507 = vunpack.c.l.b16 %v451
      %v508 = vunpack.c.l.b16 %v452
      %v509 = vunpack.c.l.b16 %v453
      %v510 = vunpack.c.l.b16 %v454
      %v511 = vunpack.c.l.b16 %v455
      %v512 = vunpack.c.l.b16 %v456
      %v513 = vunpack.c.l.b16 %v457
      %v514 = vunpack.c.l.b16 %v458
      %v515 = vpack.c.b16 %v500, %v499
      %v516 = vpack.c.b16 %v502, %v501
      %v517 = vpack.c.b16 %v504, %v503
      %v518 = vpack.c.b16 %v506, %v505
      %v519 = vpack.c.b16 %v508, %v507
      %v520 = vpack.c.b16 %v510, %v509
      %v521 = vpack.c.b16 %v512, %v511
      %v522 = vpack.c.b16 %v514, %v513
      %531 = vmatprep.subr.bf16.mxu0 0
      %532 = vmatpush1.bf16.msra.mxu0 %v515
      %533 = vmatprep.subr.bf16.mxu0 0
      %534 = vmatpush1.bf16.msra.mxu0 %v516
      %535 = vmatprep.subr.bf16.mxu0 0
      %536 = vmatpush1.bf16.msra.mxu0 %v517
      %537 = vmatprep.subr.bf16.mxu0 0
      %538 = vmatpush1.bf16.msra.mxu0 %v518
      %539 = vmatprep.subr.bf16.mxu0 0
      %540 = vmatpush1.bf16.msra.mxu0 %v519
      %541 = vmatprep.subr.bf16.mxu0 0
      %542 = vmatpush1.bf16.msra.mxu0 %v520
      %543 = vmatprep.subr.bf16.mxu0 0
      %544 = vmatpush1.bf16.msra.mxu0 %v521
      %545 = vmatprep.subr.bf16.mxu0 0
      %546 = vmatpush1.bf16.msra.mxu0 %v522
      %547 = vmatprep.subr.bf16.mxu0 0
      %548 = vmatpush1.bf16.msra.mxu0 0
      %549 = vmatprep.subr.bf16.mxu0 0
      %550 = vmatpush1.bf16.msra.mxu0 0
      %551 = vmatprep.subr.bf16.mxu0 0
      %552 = vmatpush1.bf16.msra.mxu0 0
      %553 = vmatprep.subr.bf16.mxu0 0
      %554 = vmatpush1.bf16.msra.mxu0 0
      %555 = vmatprep.subr.bf16.mxu0 0
      %556 = vmatpush1.bf16.msra.mxu0 0
      %557 = vmatprep.subr.bf16.mxu0 0
      %558 = vmatpush1.bf16.msra.mxu0 0
      %559 = vmatprep.subr.bf16.mxu0 0
      %560 = vmatpush1.bf16.msra.mxu0 0
      %561 = vmatprep.subr.bf16.mxu0 0
      %562 = vmatpush1.bf16.msra.mxu0 0
      %563 = vmatprep.mubr.bf16.mxu0 0
      %564 = vmatmul.mubr.bf16.gmra.mrb[0].mxu0 %v475
      %v565 = vpop.f32.mrb[0].mxu0
      %v566 = vadd.f32 0.0, %v565
      %v567 = vpop.f32.mrb[0].mxu0
      %v568 = vpop.f32.mrb[0].mxu0
      %v569 = vadd.f32 0.0, %v568
      %v570 = vpop.f32.mrb[0].mxu0
      %571 = vmatprep.mubr.bf16.mxu0 0
      %572 = vmatmul.mubr.bf16.gmra.mrb[0].mxu0 %v476
      %v573 = vpop.f32.mrb[0].mxu0
      %v574 = vadd.f32 0.0, %v573
      %v575 = vpop.f32.mrb[0].mxu0
      %v576 = vpop.f32.mrb[0].mxu0
      %v577 = vadd.f32 0.0, %v576
      %v578 = vpop.f32.mrb[0].mxu0
      %579 = vmatprep.mubr.bf16.mxu0 0
      %580 = vmatmul.mubr.bf16.gmra.mrb[0].mxu0 %v477
      %v581 = vpop.f32.mrb[0].mxu0
      %v582 = vadd.f32 0.0, %v581
      %v583 = vpop.f32.mrb[0].mxu0
      %v584 = vpop.f32.mrb[0].mxu0
      %v585 = vadd.f32 0.0, %v584
      %v586 = vpop.f32.mrb[0].mxu0
      %587 = vmatprep.mubr.bf16.mxu0 0
      %588 = vmatmul.mubr.bf16.gmra.mrb[0].mxu0 %v478
      %v589 = vpop.f32.mrb[0].mxu0
      %v590 = vadd.f32 0.0, %v589
      %v591 = vpop.f32.mrb[0].mxu0
      %v592 = vpop.f32.mrb[0].mxu0
      %v593 = vadd.f32 0.0, %v592
      %v594 = vpop.f32.mrb[0].mxu0
      %595 = vdwg.mxu0
      %v604 = vunpack.c.l.b16 %v410
      %v605 = vunpack.c.l.b16 %v411
      %v606 = vunpack.c.l.b16 %v412
      %v607 = vunpack.c.l.b16 %v413
      %v608 = vunpack.c.l.b16 %v414
      %v609 = vunpack.c.l.b16 %v415
      %v610 = vunpack.c.l.b16 %v416
      %v611 = vunpack.c.l.b16 %v417
      %v612 = vpack.c.b16 %v605, %v604
      %v613 = vpack.c.b16 %v607, %v606
      %v614 = vpack.c.b16 %v609, %v608
      %v615 = vpack.c.b16 %v611, %v610
      %v636 = vunpack.c.l.b16 %v418
      %v637 = vunpack.c.l.b16 %v419
      %v638 = vunpack.c.l.b16 %v420
      %v639 = vunpack.c.l.b16 %v421
      %v640 = vunpack.c.l.b16 %v422
      %v641 = vunpack.c.l.b16 %v423
      %v642 = vunpack.c.l.b16 %v424
      %v643 = vunpack.c.l.b16 %v425
      %v644 = vunpack.c.l.b16 %v426
      %v645 = vunpack.c.l.b16 %v427
      %v646 = vunpack.c.l.b16 %v428
      %v647 = vunpack.c.l.b16 %v429
      %v648 = vunpack.c.l.b16 %v430
      %v649 = vunpack.c.l.b16 %v431
      %v650 = vunpack.c.l.b16 %v432
      %v651 = vunpack.c.l.b16 %v433
      %v652 = vpack.c.b16 %v637, %v636
      %v653 = vpack.c.b16 %v639, %v638
      %v654 = vpack.c.b16 %v641, %v640
      %v655 = vpack.c.b16 %v643, %v642
      %v656 = vpack.c.b16 %v645, %v644
      %v657 = vpack.c.b16 %v647, %v646
      %v658 = vpack.c.b16 %v649, %v648
      %v659 = vpack.c.b16 %v651, %v650
      %668 = vmatprep.subr.bf16.mxu0 0
      %669 = vmatpush1.bf16.msra.mxu0 %v652
      %670 = vmatprep.subr.bf16.mxu0 0
      %671 = vmatpush1.bf16.msra.mxu0 %v653
      %672 = vmatprep.subr.bf16.mxu0 0
      %673 = vmatpush1.bf16.msra.mxu0 %v654
      %674 = vmatprep.subr.bf16.mxu0 0
      %675 = vmatpush1.bf16.msra.mxu0 %v655
      %676 = vmatprep.subr.bf16.mxu0 0
      %677 = vmatpush1.bf16.msra.mxu0 %v656
      %678 = vmatprep.subr.bf16.mxu0 0
      %679 = vmatpush1.bf16.msra.mxu0 %v657
      %680 = vmatprep.subr.bf16.mxu0 0
      %681 = vmatpush1.bf16.msra.mxu0 %v658
      %682 = vmatprep.subr.bf16.mxu0 0
      %683 = vmatpush1.bf16.msra.mxu0 %v659
      %684 = vmatprep.subr.bf16.mxu0 0
      %685 = vmatpush1.bf16.msra.mxu0 0
      %686 = vmatprep.subr.bf16.mxu0 0
      %687 = vmatpush1.bf16.msra.mxu0 0
      %688 = vmatprep.subr.bf16.mxu0 0
      %689 = vmatpush1.bf16.msra.mxu0 0
      %690 = vmatprep.subr.bf16.mxu0 0
      %691 = vmatpush1.bf16.msra.mxu0 0
      %692 = vmatprep.subr.bf16.mxu0 0
      %693 = vmatpush1.bf16.msra.mxu0 0
      %694 = vmatprep.subr.bf16.mxu0 0
      %695 = vmatpush1.bf16.msra.mxu0 0
      %696 = vmatprep.subr.bf16.mxu0 0
      %697 = vmatpush1.bf16.msra.mxu0 0
      %698 = vmatprep.subr.bf16.mxu0 0
      %699 = vmatpush1.bf16.msra.mxu0 0
      %700 = vmatprep.mubr.bf16.mxu0 0
      %701 = vmatmul.mubr.bf16.gmra.mrb[0].mxu0 %v612
      %v702 = vpop.f32.mrb[0].mxu0
      %v703 = vadd.f32 %v566, %v702
      %v704 = vpop.f32.mrb[0].mxu0
      %v705 = vpop.f32.mrb[0].mxu0
      %v706 = vadd.f32 %v569, %v705
      %v707 = vpop.f32.mrb[0].mxu0
      %708 = vmatprep.mubr.bf16.mxu0 0
      %709 = vmatmul.mubr.bf16.gmra.mrb[0].mxu0 %v613
      %v710 = vpop.f32.mrb[0].mxu0
      %v711 = vadd.f32 %v574, %v710
      %v712 = vpop.f32.mrb[0].mxu0
      %v713 = vpop.f32.mrb[0].mxu0
      %v714 = vadd.f32 %v577, %v713
      %v715 = vpop.f32.mrb[0].mxu0
      %716 = vmatprep.mubr.bf16.mxu0 0
      %717 = vmatmul.mubr.bf16.gmra.mrb[0].mxu0 %v614
      %v718 = vpop.f32.mrb[0].mxu0
      %v719 = vadd.f32 %v582, %v718
      %v720 = vpop.f32.mrb[0].mxu0
      %v721 = vpop.f32.mrb[0].mxu0
      %v722 = vadd.f32 %v585, %v721
      %v723 = vpop.f32.mrb[0].mxu0
      %724 = vmatprep.mubr.bf16.mxu0 0
      %725 = vmatmul.mubr.bf16.gmra.mrb[0].mxu0 %v615
      %v726 = vpop.f32.mrb[0].mxu0
      %v727 = vadd.f32 %v590, %v726
      %v728 = vpop.f32.mrb[0].mxu0
      %v729 = vpop.f32.mrb[0].mxu0
      %v730 = vadd.f32 %v593, %v729
      %v731 = vpop.f32.mrb[0].mxu0
      %732 = vdwg.mxu0
      %v733 = vld [vmem:[%s392] sm:$0xf]
      %v734 = vld [vmem:[%s392 + $0x4] sm:$0xf]
      %v735 = vld [vmem:[%s392 + $0x8] sm:$0xf]
      %v736 = vld [vmem:[%s392 + $0xc] sm:$0xf]
      %v737 = vld [vmem:[%s392 + $0x10] sm:$0xf]
      %v738 = vld [vmem:[%s392 + $0x14] sm:$0xf]
      %v739 = vld [vmem:[%s392 + $0x18] sm:$0xf]
      %v740 = vld [vmem:[%s392 + $0x1c] sm:$0xf]
      %s741 = scalar_lea.vmem %s3, 128
      %v742 = vld [vmem:[%s741] sm:$0xf]
      %v743 = vld [vmem:[%s741 + $0x4] sm:$0xf]
      %v744 = vld [vmem:[%s741 + $0x8] sm:$0xf]
      %v745 = vld [vmem:[%s741 + $0xc] sm:$0xf]
      %v746 = vld [vmem:[%s741 + $0x10] sm:$0xf]
      %v747 = vld [vmem:[%s741 + $0x14] sm:$0xf]
      %v748 = vld [vmem:[%s741 + $0x18] sm:$0xf]
      %v749 = vld [vmem:[%s741 + $0x1c] sm:$0xf]
      %v750 = vld [vmem:[%s741 + $0x20] sm:$0xf]
      %v751 = vld [vmem:[%s741 + $0x24] sm:$0xf]
      %v752 = vld [vmem:[%s741 + $0x28] sm:$0xf]
      %v753 = vld [vmem:[%s741 + $0x2c] sm:$0xf]
      %v754 = vld [vmem:[%s741 + $0x30] sm:$0xf]
      %v755 = vld [vmem:[%s741 + $0x34] sm:$0xf]
      %v756 = vld [vmem:[%s741 + $0x38] sm:$0xf]
      %v757 = vld [vmem:[%s741 + $0x3c] sm:$0xf]
      %v766 = vunpack.c.l.b16 %v733
      %v767 = vunpack.c.l.b16 %v734
      %v768 = vunpack.c.l.b16 %v735
      %v769 = vunpack.c.l.b16 %v736
      %v770 = vunpack.c.l.b16 %v737
      %v771 = vunpack.c.l.b16 %v738
      %v772 = vunpack.c.l.b16 %v739
      %v773 = vunpack.c.l.b16 %v740
      %v774 = vpack.c.b16 %v767, %v766
      %v775 = vpack.c.b16 %v769, %v768
      %v776 = vpack.c.b16 %v771, %v770
      %v777 = vpack.c.b16 %v773, %v772
      %v798 = vunpack.c.l.b16 %v742
      %v799 = vunpack.c.l.b16 %v743
      %v800 = vunpack.c.l.b16 %v744
      %v801 = vunpack.c.l.b16 %v745
      %v802 = vunpack.c.l.b16 %v746
      %v803 = vunpack.c.l.b16 %v747
      %v804 = vunpack.c.l.b16 %v748
      %v805 = vunpack.c.l.b16 %v749
      %v806 = vunpack.c.l.b16 %v750
      %v807 = vunpack.c.l.b16 %v751
      %v808 = vunpack.c.l.b16 %v752
      %v809 = vunpack.c.l.b16 %v753
      %v810 = vunpack.c.l.b16 %v754
      %v811 = vunpack.c.l.b16 %v755
      %v812 = vunpack.c.l.b16 %v756
      %v813 = vunpack.c.l.b16 %v757
      %v814 = vpack.c.b16 %v799, %v798
      %v815 = vpack.c.b16 %v801, %v800
      %v816 = vpack.c.b16 %v803, %v802
      %v817 = vpack.c.b16 %v805, %v804
      %v818 = vpack.c.b16 %v807, %v806
      %v819 = vpack.c.b16 %v809, %v808
      %v820 = vpack.c.b16 %v811, %v810
      %v821 = vpack.c.b16 %v813, %v812
      %830 = vmatprep.subr.bf16.mxu0 0
      %831 = vmatpush1.bf16.msra.mxu0 %v814
      %832 = vmatprep.subr.bf16.mxu0 0
      %833 = vmatpush1.bf16.msra.mxu0 %v815
      %834 = vmatprep.subr.bf16.mxu0 0
      %835 = vmatpush1.bf16.msra.mxu0 %v816
      %836 = vmatprep.subr.bf16.mxu0 0
      %837 = vmatpush1.bf16.msra.mxu0 %v817
      %838 = vmatprep.subr.bf16.mxu0 0
      %839 = vmatpush1.bf16.msra.mxu0 %v818
      %840 = vmatprep.subr.bf16.mxu0 0
      %841 = vmatpush1.bf16.msra.mxu0 %v819
      %842 = vmatprep.subr.bf16.mxu0 0
      %843 = vmatpush1.bf16.msra.mxu0 %v820
      %844 = vmatprep.subr.bf16.mxu0 0
      %845 = vmatpush1.bf16.msra.mxu0 %v821
      %846 = vmatprep.subr.bf16.mxu0 0
      %847 = vmatpush1.bf16.msra.mxu0 0
      %848 = vmatprep.subr.bf16.mxu0 0
      %849 = vmatpush1.bf16.msra.mxu0 0
      %850 = vmatprep.subr.bf16.mxu0 0
      %851 = vmatpush1.bf16.msra.mxu0 0
      %852 = vmatprep.subr.bf16.mxu0 0
      %853 = vmatpush1.bf16.msra.mxu0 0
      %854 = vmatprep.subr.bf16.mxu0 0
      %855 = vmatpush1.bf16.msra.mxu0 0
      %856 = vmatprep.subr.bf16.mxu0 0
      %857 = vmatpush1.bf16.msra.mxu0 0
      %858 = vmatprep.subr.bf16.mxu0 0
      %859 = vmatpush1.bf16.msra.mxu0 0
      %860 = vmatprep.subr.bf16.mxu0 0
      %861 = vmatpush1.bf16.msra.mxu0 0
      %862 = vmatprep.mubr.bf16.mxu0 0
      %863 = vmatmul.mubr.bf16.gmra.mrb[0].mxu0 %v774
      %v864 = vpop.f32.mrb[0].mxu0
      %v865 = vadd.f32 0.0, %v864
      %v866 = vpop.f32.mrb[0].mxu0
      %v867 = vpop.f32.mrb[0].mxu0
      %v868 = vadd.f32 0.0, %v867
      %v869 = vpop.f32.mrb[0].mxu0
      %870 = vmatprep.mubr.bf16.mxu0 0
      %871 = vmatmul.mubr.bf16.gmra.mrb[0].mxu0 %v775
      %v872 = vpop.f32.mrb[0].mxu0
      %v873 = vadd.f32 0.0, %v872
      %v874 = vpop.f32.mrb[0].mxu0
      %v875 = vpop.f32.mrb[0].mxu0
      %v876 = vadd.f32 0.0, %v875
      %v877 = vpop.f32.mrb[0].mxu0
      %878 = vmatprep.mubr.bf16.mxu0 0
      %879 = vmatmul.mubr.bf16.gmra.mrb[0].mxu0 %v776
      %v880 = vpop.f32.mrb[0].mxu0
      %v881 = vadd.f32 0.0, %v880
      %v882 = vpop.f32.mrb[0].mxu0
      %v883 = vpop.f32.mrb[0].mxu0
      %v884 = vadd.f32 0.0, %v883
      %v885 = vpop.f32.mrb[0].mxu0
      %886 = vmatprep.mubr.bf16.mxu0 0
      %887 = vmatmul.mubr.bf16.gmra.mrb[0].mxu0 %v777
      %v888 = vpop.f32.mrb[0].mxu0
      %v889 = vadd.f32 0.0, %v888
      %v890 = vpop.f32.mrb[0].mxu0
      %v891 = vpop.f32.mrb[0].mxu0
      %v892 = vadd.f32 0.0, %v891
      %v893 = vpop.f32.mrb[0].mxu0
      %894 = vdwg.mxu0
      %v895 = vadd.f32 %v703, %v865
      %v896 = vadd.f32 %v706, %v868
      %v897 = vadd.f32 %v711, %v873
      %v898 = vadd.f32 %v714, %v876
      %v899 = vadd.f32 %v719, %v881
      %v900 = vadd.f32 %v722, %v884
      %v901 = vadd.f32 %v727, %v889
      %v902 = vadd.f32 %v730, %v892
      %v903 = vld [vmem:[%s4] sm:$0x1]
      %v905 = vlaneseq
      %v906 = vshrl.u32 %v905, 7
      %v907 = vsub.s32 0, %v906
      %v908 = vrot.slane %v903, %v907
      %v910 = vadd.f32 %v895, %v908
      %v911 = vadd.f32 %v896, %v908
      %v912 = vadd.f32 %v897, %v908
      %v913 = vadd.f32 %v898, %v908
      %v914 = vadd.f32 %v899, %v908
      %v915 = vadd.f32 %v900, %v908
      %v916 = vadd.f32 %v901, %v908
      %v917 = vadd.f32 %v902, %v908
      %v918 = vmax.f32 %v910, 0.0
      %v919 = vmax.f32 %v911, 0.0
      %v920 = vmax.f32 %v912, 0.0
      %v921 = vmax.f32 %v913, 0.0
      %v922 = vmax.f32 %v914, 0.0
      %v923 = vmax.f32 %v915, 0.0
      %v924 = vmax.f32 %v916, 0.0
      %v925 = vmax.f32 %v917, 0.0
      %v926 = vpack.c.bf16 %v919, %v918
      %v927 = vpack.c.bf16 %v921, %v920
      %v928 = vpack.c.bf16 %v923, %v922
      %v929 = vpack.c.bf16 %v925, %v924
      %v934 = vunpack.c.l.b16 %v926
      %v935 = vunpack.c.h.b16 %v926
      %v936 = vunpack.c.l.b16 %v927
      %v937 = vunpack.c.h.b16 %v927
      %v938 = vunpack.c.l.b16 %v928
      %v939 = vunpack.c.h.b16 %v928
      %v940 = vunpack.c.l.b16 %v929
      %v941 = vunpack.c.h.b16 %v929
      %v942 = vpack.c.b16 %v934, %v934
      %v943 = vpack.c.b16 %v935, %v935
      %v944 = vpack.c.b16 %v936, %v936
      %v945 = vpack.c.b16 %v937, %v937
      %v946 = vpack.c.b16 %v938, %v938
      %v947 = vpack.c.b16 %v939, %v939
      %v948 = vpack.c.b16 %v940, %v940
      %v949 = vpack.c.b16 %v941, %v941
      %958 = vst [vmem:[%s407] sm:$0xf] %v942
      %959 = vst [vmem:[%s407 + $0x4] sm:$0xf] %v943
      %960 = vst [vmem:[%s407 + $0x8] sm:$0xf] %v944
      %961 = vst [vmem:[%s407 + $0xc] sm:$0xf] %v945
      %962 = vst [vmem:[%s407 + $0x10] sm:$0xf] %v946
      %963 = vst [vmem:[%s407 + $0x14] sm:$0xf] %v947
      %964 = vst [vmem:[%s407 + $0x18] sm:$0xf] %v948
      %965 = vst [vmem:[%s407 + $0x1c] sm:$0xf] %v949
      %s966 = smul.u32 8, %s23
      %p967 = scmp.lt.s32.totalorder %s21, 1
      %s968 = scalar_select %p967, %s21, 1
      %p969 = scmp.lt.s32.totalorder %s22, 3
      %s970 = scalar_select %p969, %s22, 3
      %p971 = scmp.lt.s32.totalorder %s966, 7
      %s972 = scalar_select %p971, %s966, 7
      %s973 = smul.addr %s970, 8
      %s974 = sadd.s32 %s972, %s973
      %s975 = smul.addr %s968, 32
      %s976 = sadd.s32 %s974, %s975
      %s977 = smul.addr %s976, 4
      %s978 = scalar_lea.vmem %s5, %s977
      // Predicated region
      $region41: #{res_block_forward.2} parent=39 // pred_check
        %p979 = pneg %p193
      $region42: #{res_block_forward.2} parent=39 // pred_check_branch
        %981 = sbr.rel (%p979) target = $region44
      $region43: #{res_block_forward.2} parent=39 // pred_region
        %s982 = smul.u32 8, %s23
      $region44: #{res_block_forward.2} parent=39 // pred_fallthru
        _
    $region40: #{res_block_forward.2} parent=5 // pred_fallthru
      _
    %p983 = scmp.le.s32.totalorder 2, %s11
    // Predicated region
    $region45: #{res_block_forward.2} parent=5 // pred_check
      %p984 = pneg %p983
    $region46: #{res_block_forward.2} parent=5 // pred_check_branch
      %986 = sbr.rel (%p984) target = $region48
    $region47: #{res_block_forward.2} parent=5 // pred_region
      %s987 = ssub.s32 %s11, 2
      // Predicated region
      $region49: #{res_block_forward.2} parent=47 // pred_check
        %p988 = pneg %p199
      $region50: #{res_block_forward.2} parent=47 // pred_check_branch
        %990 = sbr.rel (%p988) target = $region52
      $region51: #{res_block_forward.2} parent=47 // pred_region
        %s991 = smul.u32 8, %s26
        %p992 = scmp.lt.s32.totalorder %s24, 1
        %s993 = scalar_select %p992, %s24, 1
        %p994 = scmp.lt.s32.totalorder %s25, 3
        %s995 = scalar_select %p994, %s25, 3
        %p996 = scmp.lt.s32.totalorder %s991, 7
        %s997 = scalar_select %p996, %s991, 7
        %s998 = smul.addr %s995, 8
        %s999 = sadd.s32 %s997, %s998
        %s1000 = smul.addr %s993, 32
        %s1001 = sadd.s32 %s999, %s1000
        %s1002 = smul.addr %s1001, 4
        %s1003 = scalar_lea.vmem %s5, %s1002
      $region52: #{res_block_forward.2} parent=47 // pred_fallthru
        _
    $region48: #{res_block_forward.2} parent=5 // pred_fallthru
      _
  $region6: #{res_block_forward.2} parent=0 // loop_footer
    %s15 = sadd.s32 1, %s11
  $region7: #{res_block_forward.2} parent=0 // loop_footer_branch
    %10 = sbr.rel target = $region3
  $region8: #{res_block_forward.2} parent=0 // loop_exit
    _

// kernel: res_block_forward.3
$region0: #{res_block_forward.3}
  #allocation0 [shape = 'u32[]', space=smem, size = 0x4, offset = 0x4, fixed_abs, tag = 'smem constant byte address 0x4 - core index']
  #allocation1 [shape = 'u32[144,128]{1,0:T(1,128)}', space=vmem, size = 0x12000, scoped, tag = 'internal scratch']
  %s0 = inlined_call_operand.vmem [shape: bf16[8,30,512], index: 0, kind: input, shape index: {}]
  %s1 = inlined_call_operand.vmem [shape: bf16[8,20,128], index: 1, kind: input, shape index: {}]
  %s2 = inlined_call_operand.vmem [shape: bf16[9,128,128], index: 2, kind: input, shape index: {}]
  %s3 = inlined_call_operand.vmem [shape: f32[1,128], index: 3, kind: input, shape index: {}]
  %s4 = inlined_call_operand.vmem [shape: bf16[128,128], index: 4, kind: input, shape index: {}]
  %s5 = inlined_call_operand.vmem [shape: bf16[128,128], index: 5, kind: input, shape index: {}]
  %s6 = inlined_call_operand.vmem [shape: f32[1,128], index: 6, kind: input, shape index: {}]
  %s7 = inlined_call_operand.vmem [shape: bf16[8,20,128], index: 7, kind: output, shape index: {}]
  %s8 = sld [smem:[#allocation0]]
  $region61: #{res_block_forward.3} parent=0
    _
  %s10 = ssub.s32 1, %s8
  %s11 = scalar_select 0, %s10, %s8
  loop: start=0, step=1, limit=10
  $region2: #{res_block_forward.3} parent=0 // loop_pre_header
    _
  $region3: #{res_block_forward.3} parent=0 // loop_header
    %s13 = sphi 0, %s17
    %p14 = scmp.ge.s32.totalorder %s13, 10
    %s23 = sphi 0, %s25
    %s26 = sphi 0, %s23
    %s27 = sphi 0, %s26
    %s43 = sphi 0, %s27
    %s49 = sphi 0, %s51
    %s52 = sphi 0, %s49
    %s53 = sphi 0, %s52
    %s69 = sphi 0, %s53
    %s73 = sphi 0, %s73
    %s75 = sphi 0, %s73
    %s76 = sphi 0, %s75
    %s90 = sphi 0, %s76
    %s94 = sphi 0, %s94
    %s96 = sphi 0, %s94
    %s97 = sphi 0, %s96
    %s111 = sphi 0, %s97
    %s115 = sphi 0, %s115
    %s117 = sphi 0, %s115
    %s118 = sphi 0, %s117
    %s132 = sphi 0, %s118
    %s136 = sphi 0, %s136
    %s138 = sphi 0, %s136
    %s139 = sphi 0, %s138
    %s153 = sphi 0, %s139
    %s157 = sphi 0, %s157
    %s159 = sphi 0, %s157
    %s160 = sphi 0, %s159
    %s174 = sphi 0, %s160
    %s180 = sphi 0, %s182
    %s183 = sphi 0, %s180
    %s184 = sphi 0, %s183
    %s200 = sphi 0, %s184
  $region4: #{res_block_forward.3} parent=0 // loop_header_branch
    %16 = sbr.rel (%p14) target = $region8
  $region5: #{res_block_forward.3} parent=0 // loop_body
    %s18 = ssub.s32 %s13, 1
    %s19 = ssub.s32 %s13, 2
    %s20 = sadd.s32 %s13, 1
    %s21 = ssub.s32 %s13, %s20
    %p22 = scmp.eq.s32.totalorder %s21, 0
    %s24 = sadd.s32 %s23, 1
    %s25 = scalar_select %p22, %s23, %s24
    %p28 = pneg %p22
    %p29 = scmp.eq.s32.totalorder %s13, 7
    %p30 = por %p28, %p29
    %p31 = scmp.ne.s32.totalorder %s23, %s26
    %p32 = scmp.eq.s32.totalorder %s13, 0
    %p33 = por %p31, %p32
    %p34 = scmp.ne.s32.totalorder %s23, %s26
    %p35 = scmp.eq.s32.totalorder %s18, 7
    %p36 = por %p34, %p35
    %p37 = scmp.ne.s32.totalorder %s26, %s27
    %p38 = scmp.eq.s32.totalorder %s18, 0
    %p39 = por %p37, %p38
    %p40 = scmp.ne.s32.totalorder %s26, %s27
    %p41 = scmp.eq.s32.totalorder %s19, 7
    %p42 = por %p40, %p41
    %p44 = scmp.ne.s32.totalorder %s27, %s43
    %p45 = scmp.eq.s32.totalorder %s19, 0
    %p46 = por %p44, %p45
    %s47 = ssub.s32 %s13, %s20
    %p48 = scmp.eq.s32.totalorder %s47, 0
    %s50 = sadd.s32 %s49, 1
    %s51 = scalar_select %p48, %s49, %s50
    %p54 = pneg %p48
    %p55 = scmp.eq.s32.totalorder %s13, 7
    %p56 = por %p54, %p55
    %p57 = scmp.ne.s32.totalorder %s49, %s52
    %p58 = scmp.eq.s32.totalorder %s13, 0
    %p59 = por %p57, %p58
    %p60 = scmp.ne.s32.totalorder %s49, %s52
    %p61 = scmp.eq.s32.totalorder %s18, 7
    %p62 = por %p60, %p61
    %p63 = scmp.ne.s32.totalorder %s52, %s53
    %p64 = scmp.eq.s32.totalorder %s18, 0
    %p65 = por %p63, %p64
    %p66 = scmp.ne.s32.totalorder %s52, %s53
    %p67 = scmp.eq.s32.totalorder %s19, 7
    %p68 = por %p66, %p67
    %p70 = scmp.ne.s32.totalorder %s53, %s69
    %p71 = scmp.eq.s32.totalorder %s19, 0
    %p72 = por %p70, %p71
    %s74 = sadd.s32 %s73, 1
    %p77 = scmp.eq.s32.totalorder %s13, 7
    %p78 = scmp.ne.s32.totalorder %s73, %s75
    %p79 = scmp.eq.s32.totalorder %s13, 0
    %p80 = por %p78, %p79
    %p81 = scmp.ne.s32.totalorder %s73, %s75
    %p82 = scmp.eq.s32.totalorder %s18, 7
    %p83 = por %p81, %p82
    %p84 = scmp.ne.s32.totalorder %s75, %s76
    %p85 = scmp.eq.s32.totalorder %s18, 0
    %p86 = por %p84, %p85
    %p87 = scmp.ne.s32.totalorder %s75, %s76
    %p88 = scmp.eq.s32.totalorder %s19, 7
    %p89 = por %p87, %p88
    %p91 = scmp.ne.s32.totalorder %s76, %s90
    %p92 = scmp.eq.s32.totalorder %s19, 0
    %p93 = por %p91, %p92
    %s95 = sadd.s32 %s94, 1
    %p98 = scmp.eq.s32.totalorder %s13, 7
    %p99 = scmp.ne.s32.totalorder %s94, %s96
    %p100 = scmp.eq.s32.totalorder %s13, 0
    %p101 = por %p99, %p100
    %p102 = scmp.ne.s32.totalorder %s94, %s96
    %p103 = scmp.eq.s32.totalorder %s18, 7
    %p104 = por %p102, %p103
    %p105 = scmp.ne.s32.totalorder %s96, %s97
    %p106 = scmp.eq.s32.totalorder %s18, 0
    %p107 = por %p105, %p106
    %p108 = scmp.ne.s32.totalorder %s96, %s97
    %p109 = scmp.eq.s32.totalorder %s19, 7
    %p110 = por %p108, %p109
    %p112 = scmp.ne.s32.totalorder %s97, %s111
    %p113 = scmp.eq.s32.totalorder %s19, 0
    %p114 = por %p112, %p113
    %s116 = sadd.s32 %s115, 1
    %p119 = scmp.eq.s32.totalorder %s13, 7
    %p120 = scmp.ne.s32.totalorder %s115, %s117
    %p121 = scmp.eq.s32.totalorder %s13, 0
    %p122 = por %p120, %p121
    %p123 = scmp.ne.s32.totalorder %s115, %s117
    %p124 = scmp.eq.s32.totalorder %s18, 7
    %p125 = por %p123, %p124
    %p126 = scmp.ne.s32.totalorder %s117, %s118
    %p127 = scmp.eq.s32.totalorder %s18, 0
    %p128 = por %p126, %p127
    %p129 = scmp.ne.s32.totalorder %s117, %s118
    %p130 = scmp.eq.s32.totalorder %s19, 7
    %p131 = por %p129, %p130
    %p133 = scmp.ne.s32.totalorder %s118, %s132
    %p134 = scmp.eq.s32.totalorder %s19, 0
    %p135 = por %p133, %p134
    %s137 = sadd.s32 %s136, 1
    %p140 = scmp.eq.s32.totalorder %s13, 7
    %p141 = scmp.ne.s32.totalorder %s136, %s138
    %p142 = scmp.eq.s32.totalorder %s13, 0
    %p143 = por %p141, %p142
    %p144 = scmp.ne.s32.totalorder %s136, %s138
    %p145 = scmp.eq.s32.totalorder %s18, 7
    %p146 = por %p144, %p145
    %p147 = scmp.ne.s32.totalorder %s138, %s139
    %p148 = scmp.eq.s32.totalorder %s18, 0
    %p149 = por %p147, %p148
    %p150 = scmp.ne.s32.totalorder %s138, %s139
    %p151 = scmp.eq.s32.totalorder %s19, 7
    %p152 = por %p150, %p151
    %p154 = scmp.ne.s32.totalorder %s139, %s153
    %p155 = scmp.eq.s32.totalorder %s19, 0
    %p156 = por %p154, %p155
    %s158 = sadd.s32 %s157, 1
    %p161 = scmp.eq.s32.totalorder %s13, 7
    %p162 = scmp.ne.s32.totalorder %s157, %s159
    %p163 = scmp.eq.s32.totalorder %s13, 0
    %p164 = por %p162, %p163
    %p165 = scmp.ne.s32.totalorder %s157, %s159
    %p166 = scmp.eq.s32.totalorder %s18, 7
    %p167 = por %p165, %p166
    %p168 = scmp.ne.s32.totalorder %s159, %s160
    %p169 = scmp.eq.s32.totalorder %s18, 0
    %p170 = por %p168, %p169
    %p171 = scmp.ne.s32.totalorder %s159, %s160
    %p172 = scmp.eq.s32.totalorder %s19, 7
    %p173 = por %p171, %p172
    %p175 = scmp.ne.s32.totalorder %s160, %s174
    %p176 = scmp.eq.s32.totalorder %s19, 0
    %p177 = por %p175, %p176
    %s178 = ssub.s32 %s13, %s20
    %p179 = scmp.eq.s32.totalorder %s178, 0
    %s181 = sadd.s32 %s180, 1
    %s182 = scalar_select %p179, %s180, %s181
    %p185 = pneg %p179
    %p186 = scmp.eq.s32.totalorder %s13, 7
    %p187 = por %p185, %p186
    %p188 = scmp.ne.s32.totalorder %s180, %s183
    %p189 = scmp.eq.s32.totalorder %s13, 0
    %p190 = por %p188, %p189
    %p191 = scmp.ne.s32.totalorder %s180, %s183
    %p192 = scmp.eq.s32.totalorder %s18, 7
    %p193 = por %p191, %p192
    %p194 = scmp.ne.s32.totalorder %s183, %s184
    %p195 = scmp.eq.s32.totalorder %s18, 0
    %p196 = por %p194, %p195
    %p197 = scmp.ne.s32.totalorder %s183, %s184
    %p198 = scmp.eq.s32.totalorder %s19, 7
    %p199 = por %p197, %p198
    %p201 = scmp.ne.s32.totalorder %s184, %s200
    %p202 = scmp.eq.s32.totalorder %s19, 0
    %p203 = por %p201, %p202
    %p204 = scmp.le.s32.totalorder 1, %s13
    %p205 = scmp.lt.s32.totalorder %s13, 9
    %p206 = pnand %p204, %p205
    %p207 = pneg %p206
    // Predicated region
    $region9: #{res_block_forward.3} parent=5 // pred_check
      _
    $region10: #{res_block_forward.3} parent=5 // pred_check_branch
      %209 = sbr.rel (%p206) target = $region12
    $region11: #{res_block_forward.3} parent=5 // pred_region
      %s210 = ssub.s32 %s13, 1
      // Predicated region
      $region13: #{res_block_forward.3} parent=11 // pred_check
        %p211 = pneg %p86
      $region14: #{res_block_forward.3} parent=11 // pred_check_branch
        %213 = sbr.rel (%p211) target = $region16
      $region15: #{res_block_forward.3} parent=11 // pred_region
        _
      $region16: #{res_block_forward.3} parent=11 // pred_fallthru
        _
      // Predicated region
      $region17: #{res_block_forward.3} parent=11 // pred_check
        %p214 = pneg %p107
      $region18: #{res_block_forward.3} parent=11 // pred_check_branch
        %216 = sbr.rel (%p214) target = $region20
      $region19: #{res_block_forward.3} parent=11 // pred_region
        _
      $region20: #{res_block_forward.3} parent=11 // pred_fallthru
        _
      // Predicated region
      $region21: #{res_block_forward.3} parent=11 // pred_check
        %p217 = pneg %p128
      $region22: #{res_block_forward.3} parent=11 // pred_check_branch
        %219 = sbr.rel (%p217) target = $region24
      $region23: #{res_block_forward.3} parent=11 // pred_region
        _
      $region24: #{res_block_forward.3} parent=11 // pred_fallthru
        _
      // Predicated region
      $region25: #{res_block_forward.3} parent=11 // pred_check
        %p220 = pneg %p149
      $region26: #{res_block_forward.3} parent=11 // pred_check_branch
        %222 = sbr.rel (%p220) target = $region28
      $region27: #{res_block_forward.3} parent=11 // pred_region
        _
      $region28: #{res_block_forward.3} parent=11 // pred_fallthru
        _
      // Predicated region
      $region29: #{res_block_forward.3} parent=11 // pred_check
        %p223 = pneg %p170
      $region30: #{res_block_forward.3} parent=11 // pred_check_branch
        %225 = sbr.rel (%p223) target = $region32
      $region31: #{res_block_forward.3} parent=11 // pred_region
        _
      $region32: #{res_block_forward.3} parent=11 // pred_fallthru
        _
    $region12: #{res_block_forward.3} parent=5 // pred_fallthru
      _
    %p226 = scmp.lt.s32.totalorder %s13, 8
    // Predicated region
    $region33: #{res_block_forward.3} parent=5 // pred_check
      %p227 = pneg %p226
    $region34: #{res_block_forward.3} parent=5 // pred_check_branch
      %229 = sbr.rel (%p227) target = $region36
    $region35: #{res_block_forward.3} parent=5 // pred_region
      // Predicated region
      $region37: #{res_block_forward.3} parent=35 // pred_check
        %p230 = pneg %p33
      $region38: #{res_block_forward.3} parent=35 // pred_check_branch
        %232 = sbr.rel (%p230) target = $region40
      $region39: #{res_block_forward.3} parent=35 // pred_region
        %p233 = scmp.lt.s32.totalorder %s13, 7
        %s234 = scalar_select %p233, %s13, 7
        %s235 = smul.addr %s234, 16
        %s236 = smul.addr %s235, 4
        %s237 = scalar_lea.vmem %s0, %s236
      $region40: #{res_block_forward.3} parent=35 // pred_fallthru
        _
      // Predicated region
      $region41: #{res_block_forward.3} parent=35 // pred_check
        %p238 = pneg %p59
      $region42: #{res_block_forward.3} parent=35 // pred_check_branch
        %240 = sbr.rel (%p238) target = $region44
      $region43: #{res_block_forward.3} parent=35 // pred_region
        %p241 = scmp.lt.s32.totalorder %s13, 7
        %s242 = scalar_select %p241, %s13, 7
        %s243 = smul.addr %s242, 3
        %s244 = smul.addr %s243, 4
        %s245 = scalar_lea.vmem %s1, %s244
      $region44: #{res_block_forward.3} parent=35 // pred_fallthru
        _
    $region36: #{res_block_forward.3} parent=5 // pred_fallthru
      _
    %p246 = scmp.le.s32.totalorder 1, %s13
    %p247 = scmp.lt.s32.totalorder %s13, 9
    %p248 = pnand %p246, %p247
    %p249 = pneg %p248
    // Predicated region
    $region45: #{res_block_forward.3} parent=5 // pred_check
      _
    $region46: #{res_block_forward.3} parent=5 // pred_check_branch
      %251 = sbr.rel (%p248) target = $region48
    $region47: #{res_block_forward.3} parent=5 // pred_region
      %s252 = ssub.s32 %s13, 1
      %p253 = scmp.lt.s32.totalorder %s18, 7
      %s254 = scalar_select %p253, %s18, 7
      %s255 = smul.addr %s254, 16
      %s256 = smul.addr %s255, 4
      %s257 = scalar_lea.vmem %s0, %s256
      %p258 = pneg %p39
      %p259 = pneg %p36
      %p260 = scmp.lt.s32.totalorder %s18, 7
      %s261 = scalar_select %p260, %s18, 7
      %s262 = smul.addr %s261, 3
      %s263 = smul.addr %s262, 4
      %s264 = scalar_lea.vmem %s1, %s263
      %p265 = pneg %p65
      %p266 = pneg %p62
      %p267 = pneg %p86
      %p268 = pneg %p83
      %p269 = pneg %p107
      %p270 = pneg %p104
      %p271 = pneg %p128
      %p272 = pneg %p125
      %p273 = pneg %p149
      %p274 = pneg %p146
      %p275 = pneg %p170
      %p276 = pneg %p167
      %p277 = pneg %p196
      %p278 = pneg %p193
      %p279 = scmp.lt.s32.totalorder %s18, 7
      %s280 = scalar_select %p279, %s18, 7
      %s281 = smul.addr %s280, 3
      %s282 = smul.addr %s281, 4
      %s283 = scalar_lea.vmem %s7, %s282
      %p284 = scmp.lt.s32.totalorder %s18, 7
      %s285 = scalar_select %p284, %s18, 7
      %s286 = smul.addr %s285, 16
      %s287 = smul.addr %s286, 4
      %s288 = scalar_lea.vmem %s0, %s287
      %p289 = scmp.lt.s32.totalorder %s18, 7
      %s290 = scalar_select %p289, %s18, 7
      %s291 = smul.addr %s290, 3
      %s292 = smul.addr %s291, 4
      %s293 = scalar_lea.vmem %s1, %s292
      %p294 = scmp.lt.s32.totalorder %s18, 7
      %s295 = scalar_select %p294, %s18, 7
      %s296 = smul.addr %s295, 3
      %s297 = smul.addr %s296, 4
      %s298 = scalar_lea.vmem %s7, %s297
      %v300 = vld [vmem:[%s288] sm:$0xf]
      %v301 = vld [vmem:[%s288 + $0x10] sm:$0xf]
      %v302 = vld [vmem:[%s288 + $0x20] sm:$0x3]
      %v303 = vld [vmem:[%s2] sm:$0xf]
      %v304 = vld [vmem:[%s2 + $0x4] sm:$0xf]
      %v305 = vld [vmem:[%s2 + $0x8] sm:$0xf]
      %v306 = vld [vmem:[%s2 + $0xc] sm:$0xf]
      %v307 = vld [vmem:[%s2 + $0x10] sm:$0xf]
      %v308 = vld [vmem:[%s2 + $0x14] sm:$0xf]
      %v309 = vld [vmem:[%s2 + $0x18] sm:$0xf]
      %v310 = vld [vmem:[%s2 + $0x1c] sm:$0xf]
      %v311 = vld [vmem:[%s2 + $0x20] sm:$0xf]
      %v312 = vld [vmem:[%s2 + $0x24] sm:$0xf]
      %v313 = vld [vmem:[%s2 + $0x28] sm:$0xf]
      %v314 = vld [vmem:[%s2 + $0x2c] sm:$0xf]
      %v315 = vld [vmem:[%s2 + $0x30] sm:$0xf]
      %v316 = vld [vmem:[%s2 + $0x34] sm:$0xf]
      %v317 = vld [vmem:[%s2 + $0x38] sm:$0xf]
      %v318 = vld [vmem:[%s2 + $0x3c] sm:$0xf]
      %v319 = vld [vmem:[%s288 + $0x4] sm:$0xf]
      %v320 = vld [vmem:[%s288 + $0x14] sm:$0xf]
      %v321 = vld [vmem:[%s288 + $0x24] sm:$0x3]
      %s322 = scalar_lea.vmem %s2, 64
      %v323 = vld [vmem:[%s322] sm:$0xf]
      %v324 = vld [vmem:[%s322 + $0x4] sm:$0xf]
      %v325 = vld [vmem:[%s322 + $0x8] sm:$0xf]
      %v326 = vld [vmem:[%s322 + $0xc] sm:$0xf]
      %v327 = vld [vmem:[%s322 + $0x10] sm:$0xf]
      %v328 = vld [vmem:[%s322 + $0x14] sm:$0xf]
      %v329 = vld [vmem:[%s322 + $0x18] sm:$0xf]
      %v330 = vld [vmem:[%s322 + $0x1c] sm:$0xf]
      %v331 = vld [vmem:[%s322 + $0x20] sm:$0xf]
      %v332 = vld [vmem:[%s322 + $0x24] sm:$0xf]
      %v333 = vld [vmem:[%s322 + $0x28] sm:$0xf]
      %v334 = vld [vmem:[%s322 + $0x2c] sm:$0xf]
      %v335 = vld [vmem:[%s322 + $0x30] sm:$0xf]
      %v336 = vld [vmem:[%s322 + $0x34] sm:$0xf]
      %v337 = vld [vmem:[%s322 + $0x38] sm:$0xf]
      %v338 = vld [vmem:[%s322 + $0x3c] sm:$0xf]
      %v342 = vunpack.c.l.b16 %v319
      %v343 = vunpack.c.l.b16 %v320
      %v344 = vunpack.c.l.b16 %v321
      %v345 = vpack.c.b16 %v343, %v342
      %v346 = vpack.c.b16 %v344, %v344
      %v365 = vunpack.c.l.b16 %v323
      %v366 = vunpack.c.l.b16 %v324
      %v367 = vunpack.c.l.b16 %v325
      %v368 = vunpack.c.l.b16 %v326
      %v369 = vunpack.c.l.b16 %v327
      %v370 = vunpack.c.l.b16 %v328
      %v371 = vunpack.c.l.b16 %v329
      %v372 = vunpack.c.l.b16 %v330
      %v373 = vunpack.c.l.b16 %v331
      %v374 = vunpack.c.l.b16 %v332
      %v375 = vunpack.c.l.b16 %v333
      %v376 = vunpack.c.l.b16 %v334
      %v377 = vunpack.c.l.b16 %v335
      %v378 = vunpack.c.l.b16 %v336
      %v379 = vunpack.c.l.b16 %v337
      %v380 = vunpack.c.l.b16 %v338
      %v381 = vpack.c.b16 %v366, %v365
      %v382 = vpack.c.b16 %v368, %v367
      %v383 = vpack.c.b16 %v370, %v369
      %v384 = vpack.c.b16 %v372, %v371
      %v385 = vpack.c.b16 %v374, %v373
      %v386 = vpack.c.b16 %v376, %v375
      %v387 = vpack.c.b16 %v378, %v377
      %v388 = vpack.c.b16 %v380, %v379
      %397 = vmatprep.subr.bf16.mxu0 0
      %398 = vmatpush1.bf16.msra.mxu0 %v381
      %399 = vmatprep.subr.bf16.mxu0 0
      %400 = vmatpush1.bf16.msra.mxu0 %v382
      %401 = vmatprep.subr.bf16.mxu0 0
      %402 = vmatpush1.bf16.msra.mxu0 %v383
      %403 = vmatprep.subr.bf16.mxu0 0
      %404 = vmatpush1.bf16.msra.mxu0 %v384
      %405 = vmatprep.subr.bf16.mxu0 0
      %406 = vmatpush1.bf16.msra.mxu0 %v385
      %407 = vmatprep.subr.bf16.mxu0 0
      %408 = vmatpush1.bf16.msra.mxu0 %v386
      %409 = vmatprep.subr.bf16.mxu0 0
      %410 = vmatpush1.bf16.msra.mxu0 %v387
      %411 = vmatprep.subr.bf16.mxu0 0
      %412 = vmatpush1.bf16.msra.mxu0 %v388
      %413 = vmatprep.subr.bf16.mxu0 0
      %414 = vmatpush1.bf16.msra.mxu0 0
      %415 = vmatprep.subr.bf16.mxu0 0
      %416 = vmatpush1.bf16.msra.mxu0 0
      %417 = vmatprep.subr.bf16.mxu0 0
      %418 = vmatpush1.bf16.msra.mxu0 0
      %419 = vmatprep.subr.bf16.mxu0 0
      %420 = vmatpush1.bf16.msra.mxu0 0
      %421 = vmatprep.subr.bf16.mxu0 0
      %422 = vmatpush1.bf16.msra.mxu0 0
      %423 = vmatprep.subr.bf16.mxu0 0
      %424 = vmatpush1.bf16.msra.mxu0 0
      %425 = vmatprep.subr.bf16.mxu0 0
      %426 = vmatpush1.bf16.msra.mxu0 0
      %427 = vmatprep.subr.bf16.mxu0 0
      %428 = vmatpush1.bf16.msra.mxu0 0
      %429 = vmatprep.mubr.bf16.mxu0 0
      %430 = vmatmul.mubr.bf16.gmra.mrb[0].mxu0 %v345
      %v431 = vpop.f32.mrb[0].mxu0
      %v432 = vadd.f32 0.0, %v431
      %v433 = vpop.f32.mrb[0].mxu0
      %v434 = vpop.f32.mrb[0].mxu0
      %v435 = vadd.f32 0.0, %v434
      %v436 = vpop.f32.mrb[0].mxu0
      %437 = vmatprep.mubr.bf16.mxu0 0
      %438 = vmatmul.mubr.bf16.gmra.mrb[0].mxu0 %v346
      %v439 = vpop.f32.mrb[0].mxu0
      %v440 = vadd.f32 0.0, %v439
      %v441 = vpop.f32.mrb[0].mxu0
      %v442 = vpop.f32.mrb[0].mxu0
      %v443 = vpop.f32.mrb[0].mxu0
      %444 = vdwg.mxu0
      %v448 = vunpack.c.l.b16 %v300
      %v449 = vunpack.c.l.b16 %v301
      %v450 = vunpack.c.l.b16 %v302
      %v451 = vpack.c.b16 %v449, %v448
      %v452 = vpack.c.b16 %v450, %v450
      %v471 = vunpack.c.l.b16 %v303
      %v472 = vunpack.c.l.b16 %v304
      %v473 = vunpack.c.l.b16 %v305
      %v474 = vunpack.c.l.b16 %v306
      %v475 = vunpack.c.l.b16 %v307
      %v476 = vunpack.c.l.b16 %v308
      %v477 = vunpack.c.l.b16 %v309
      %v478 = vunpack.c.l.b16 %v310
      %v479 = vunpack.c.l.b16 %v311
      %v480 = vunpack.c.l.b16 %v312
      %v481 = vunpack.c.l.b16 %v313
      %v482 = vunpack.c.l.b16 %v314
      %v483 = vunpack.c.l.b16 %v315
      %v484 = vunpack.c.l.b16 %v316
      %v485 = vunpack.c.l.b16 %v317
      %v486 = vunpack.c.l.b16 %v318
      %v487 = vpack.c.b16 %v472, %v471
      %v488 = vpack.c.b16 %v474, %v473
      %v489 = vpack.c.b16 %v476, %v475
      %v490 = vpack.c.b16 %v478, %v477
      %v491 = vpack.c.b16 %v480, %v479
      %v492 = vpack.c.b16 %v482, %v481
      %v493 = vpack.c.b16 %v484, %v483
      %v494 = vpack.c.b16 %v486, %v485
      %503 = vmatprep.subr.bf16.mxu0 0
      %504 = vmatpush1.bf16.msra.mxu0 %v487
      %505 = vmatprep.subr.bf16.mxu0 0
      %506 = vmatpush1.bf16.msra.mxu0 %v488
      %507 = vmatprep.subr.bf16.mxu0 0
      %508 = vmatpush1.bf16.msra.mxu0 %v489
      %509 = vmatprep.subr.bf16.mxu0 0
      %510 = vmatpush1.bf16.msra.mxu0 %v490
      %511 = vmatprep.subr.bf16.mxu0 0
      %512 = vmatpush1.bf16.msra.mxu0 %v491
      %513 = vmatprep.subr.bf16.mxu0 0
      %514 = vmatpush1.bf16.msra.mxu0 %v492
      %515 = vmatprep.subr.bf16.mxu0 0
      %516 = vmatpush1.bf16.msra.mxu0 %v493
      %517 = vmatprep.subr.bf16.mxu0 0
      %518 = vmatpush1.bf16.msra.mxu0 %v494
      %519 = vmatprep.subr.bf16.mxu0 0
      %520 = vmatpush1.bf16.msra.mxu0 0
      %521 = vmatprep.subr.bf16.mxu0 0
      %522 = vmatpush1.bf16.msra.mxu0 0
      %523 = vmatprep.subr.bf16.mxu0 0
      %524 = vmatpush1.bf16.msra.mxu0 0
      %525 = vmatprep.subr.bf16.mxu0 0
      %526 = vmatpush1.bf16.msra.mxu0 0
      %527 = vmatprep.subr.bf16.mxu0 0
      %528 = vmatpush1.bf16.msra.mxu0 0
      %529 = vmatprep.subr.bf16.mxu0 0
      %530 = vmatpush1.bf16.msra.mxu0 0
      %531 = vmatprep.subr.bf16.mxu0 0
      %532 = vmatpush1.bf16.msra.mxu0 0
      %533 = vmatprep.subr.bf16.mxu0 0
      %534 = vmatpush1.bf16.msra.mxu0 0
      %535 = vmatprep.mubr.bf16.mxu0 0
      %536 = vmatmul.mubr.bf16.gmra.mrb[0].mxu0 %v451
      %v537 = vpop.f32.mrb[0].mxu0
      %v538 = vadd.f32 %v432, %v537
      %v539 = vpop.f32.mrb[0].mxu0
      %v540 = vpop.f32.mrb[0].mxu0
      %v541 = vadd.f32 %v435, %v540
      %v542 = vpop.f32.mrb[0].mxu0
      %543 = vmatprep.mubr.bf16.mxu0 0
      %544 = vmatmul.mubr.bf16.gmra.mrb[0].mxu0 %v452
      %v545 = vpop.f32.mrb[0].mxu0
      %v546 = vadd.f32 %v440, %v545
      %v547 = vpop.f32.mrb[0].mxu0
      %v548 = vpop.f32.mrb[0].mxu0
      %v549 = vpop.f32.mrb[0].mxu0
      %550 = vdwg.mxu0
      %v551 = vld [vmem:[%s288 + $0x20] sm:$0x7]
      %s552 = scalar_lea.vmem %s2, 128
      %v553 = vld [vmem:[%s552] sm:$0xf]
      %v554 = vld [vmem:[%s552 + $0x4] sm:$0xf]
      %v555 = vld [vmem:[%s552 + $0x8] sm:$0xf]
      %v556 = vld [vmem:[%s552 + $0xc] sm:$0xf]
      %v557 = vld [vmem:[%s552 + $0x10] sm:$0xf]
      %v558 = vld [vmem:[%s552 + $0x14] sm:$0xf]
      %v559 = vld [vmem:[%s552 + $0x18] sm:$0xf]
      %v560 = vld [vmem:[%s552 + $0x1c] sm:$0xf]
      %v561 = vld [vmem:[%s552 + $0x20] sm:$0xf]
      %v562 = vld [vmem:[%s552 + $0x24] sm:$0xf]
      %v563 = vld [vmem:[%s552 + $0x28] sm:$0xf]
      %v564 = vld [vmem:[%s552 + $0x2c] sm:$0xf]
      %v565 = vld [vmem:[%s552 + $0x30] sm:$0xf]
      %v566 = vld [vmem:[%s552 + $0x34] sm:$0xf]
      %v567 = vld [vmem:[%s552 + $0x38] sm:$0xf]
      %v568 = vld [vmem:[%s552 + $0x3c] sm:$0xf]
      %v570 = vunpack.c.l.b16 %v551
      %v571 = vpack.c.b16 %v570, %v570
      %vm572 = vsmask.f32 7424
      %v574 = vshrl.u32 %v451, 16
      %v576 = vshll.u32 %v451, 16
      %v578 = vrot.slane %v576, 1
      %v579 = vor.u32 %v574, %v578
      %v581 = vshll.u32 %v571, 16
      %v583 = vrot.slane %v581, 1
      %v584 = vsel %vm572, %v579, %v583
      %v585 = vshrl.u32 %v571, 16
      %v587 = vor.u32 %v585, %v583
      %v606 = vunpack.c.l.b16 %v553
      %v607 = vunpack.c.l.b16 %v554
      %v608 = vunpack.c.l.b16 %v555
      %v609 = vunpack.c.l.b16 %v556
      %v610 = vunpack.c.l.b16 %v557
      %v611 = vunpack.c.l.b16 %v558
      %v612 = vunpack.c.l.b16 %v559
      %v613 = vunpack.c.l.b16 %v560
      %v614 = vunpack.c.l.b16 %v561
      %v615 = vunpack.c.l.b16 %v562
      %v616 = vunpack.c.l.b16 %v563
      %v617 = vunpack.c.l.b16 %v564
      %v618 = vunpack.c.l.b16 %v565
      %v619 = vunpack.c.l.b16 %v566
      %v620 = vunpack.c.l.b16 %v567
      %v621 = vunpack.c.l.b16 %v568
      %v622 = vpack.c.b16 %v607, %v606
      %v623 = vpack.c.b16 %v609, %v608
      %v624 = vpack.c.b16 %v611, %v610
      %v625 = vpack.c.b16 %v613, %v612
      %v626 = vpack.c.b16 %v615, %v614
      %v627 = vpack.c.b16 %v617, %v616
      %v628 = vpack.c.b16 %v619, %v618
      %v629 = vpack.c.b16 %v621, %v620
      %638 = vmatprep.subr.bf16.mxu0 0
      %639 = vmatpush1.bf16.msra.mxu0 %v622
      %640 = vmatprep.subr.bf16.mxu0 0
      %641 = vmatpush1.bf16.msra.mxu0 %v623
      %642 = vmatprep.subr.bf16.mxu0 0
      %643 = vmatpush1.bf16.msra.mxu0 %v624
      %644 = vmatprep.subr.bf16.mxu0 0
      %645 = vmatpush1.bf16.msra.mxu0 %v625
      %646 = vmatprep.subr.bf16.mxu0 0
      %647 = vmatpush1.bf16.msra.mxu0 %v626
      %648 = vmatprep.subr.bf16.mxu0 0
      %649 = vmatpush1.bf16.msra.mxu0 %v627
      %650 = vmatprep.subr.bf16.mxu0 0
      %651 = vmatpush1.bf16.msra.mxu0 %v628
      %652 = vmatprep.subr.bf16.mxu0 0
      %653 = vmatpush1.bf16.msra.mxu0 %v629
      %654 = vmatprep.subr.bf16.mxu0 0
      %655 = vmatpush1.bf16.msra.mxu0 0
      %656 = vmatprep.subr.bf16.mxu0 0
      %657 = vmatpush1.bf16.msra.mxu0 0
      %658 = vmatprep.subr.bf16.mxu0 0
      %659 = vmatpush1.bf16.msra.mxu0 0
      %660 = vmatprep.subr.bf16.mxu0 0
      %661 = vmatpush1.bf16.msra.mxu0 0
      %662 = vmatprep.subr.bf16.mxu0 0
      %663 = vmatpush1.bf16.msra.mxu0 0
      %664 = vmatprep.subr.bf16.mxu0 0
      %665 = vmatpush1.bf16.msra.mxu0 0
      %666 = vmatprep.subr.bf16.mxu0 0
      %667 = vmatpush1.bf16.msra.mxu0 0
      %668 = vmatprep.subr.bf16.mxu0 0
      %669 = vmatpush1.bf16.msra.mxu0 0
      %670 = vmatprep.mubr.bf16.mxu0 0
      %671 = vmatmul.mubr.bf16.gmra.mrb[0].mxu0 %v584
      %v672 = vpop.f32.mrb[0].mxu0
      %v673 = vadd.f32 0.0, %v672
      %v674 = vpop.f32.mrb[0].mxu0
      %v675 = vpop.f32.mrb[0].mxu0
      %v676 = vadd.f32 0.0, %v675
      %v677 = vpop.f32.mrb[0].mxu0
      %678 = vmatprep.mubr.bf16.mxu0 0
      %679 = vmatmul.mubr.bf16.gmra.mrb[0].mxu0 %v587
      %v680 = vpop.f32.mrb[0].mxu0
      %v681 = vadd.f32 0.0, %v680
      %v682 = vpop.f32.mrb[0].mxu0
      %v683 = vpop.f32.mrb[0].mxu0
      %v684 = vpop.f32.mrb[0].mxu0
      %685 = vdwg.mxu0
      %v686 = vadd.f32 %v538, %v673
      %v687 = vadd.f32 %v541, %v676
      %v688 = vadd.f32 %v546, %v681
      %v689 = vld [vmem:[%s288 + $0x8] sm:$0xf]
      %v690 = vld [vmem:[%s288 + $0x18] sm:$0xf]
      %v691 = vld [vmem:[%s288 + $0x28] sm:$0x3]
      %s692 = scalar_lea.vmem %s2, 192
      %v693 = vld [vmem:[%s692] sm:$0xf]
      %v694 = vld [vmem:[%s692 + $0x4] sm:$0xf]
      %v695 = vld [vmem:[%s692 + $0x8] sm:$0xf]
      %v696 = vld [vmem:[%s692 + $0xc] sm:$0xf]
      %v697 = vld [vmem:[%s692 + $0x10] sm:$0xf]
      %v698 = vld [vmem:[%s692 + $0x14] sm:$0xf]
      %v699 = vld [vmem:[%s692 + $0x18] sm:$0xf]
      %v700 = vld [vmem:[%s692 + $0x1c] sm:$0xf]
      %v701 = vld [vmem:[%s692 + $0x20] sm:$0xf]
      %v702 = vld [vmem:[%s692 + $0x24] sm:$0xf]
      %v703 = vld [vmem:[%s692 + $0x28] sm:$0xf]
      %v704 = vld [vmem:[%s692 + $0x2c] sm:$0xf]
      %v705 = vld [vmem:[%s692 + $0x30] sm:$0xf]
      %v706 = vld [vmem:[%s692 + $0x34] sm:$0xf]
      %v707 = vld [vmem:[%s692 + $0x38] sm:$0xf]
      %v708 = vld [vmem:[%s692 + $0x3c] sm:$0xf]
      %v712 = vunpack.c.l.b16 %v689
      %v713 = vunpack.c.l.b16 %v690
      %v714 = vunpack.c.l.b16 %v691
      %v715 = vpack.c.b16 %v713, %v712
      %v716 = vpack.c.b16 %v714, %v714
      %v735 = vunpack.c.l.b16 %v693
      %v736 = vunpack.c.l.b16 %v694
      %v737 = vunpack.c.l.b16 %v695
      %v738 = vunpack.c.l.b16 %v696
      %v739 = vunpack.c.l.b16 %v697
      %v740 = vunpack.c.l.b16 %v698
      %v741 = vunpack.c.l.b16 %v699
      %v742 = vunpack.c.l.b16 %v700
      %v743 = vunpack.c.l.b16 %v701
      %v744 = vunpack.c.l.b16 %v702
      %v745 = vunpack.c.l.b16 %v703
      %v746 = vunpack.c.l.b16 %v704
      %v747 = vunpack.c.l.b16 %v705
      %v748 = vunpack.c.l.b16 %v706
      %v749 = vunpack.c.l.b16 %v707
      %v750 = vunpack.c.l.b16 %v708
      %v751 = vpack.c.b16 %v736, %v735
      %v752 = vpack.c.b16 %v738, %v737
      %v753 = vpack.c.b16 %v740, %v739
      %v754 = vpack.c.b16 %v742, %v741
      %v755 = vpack.c.b16 %v744, %v743
      %v756 = vpack.c.b16 %v746, %v745
      %v757 = vpack.c.b16 %v748, %v747
      %v758 = vpack.c.b16 %v750, %v749
      %767 = vmatprep.subr.bf16.mxu0 0
      %768 = vmatpush1.bf16.msra.mxu0 %v751
      %769 = vmatprep.subr.bf16.mxu0 0
      %770 = vmatpush1.bf16.msra.mxu0 %v752
      %771 = vmatprep.subr.bf16.mxu0 0
      %772 = vmatpush1.bf16.msra.mxu0 %v753
      %773 = vmatprep.subr.bf16.mxu0 0
      %774 = vmatpush1.bf16.msra.mxu0 %v754
      %775 = vmatprep.subr.bf16.mxu0 0
      %776 = vmatpush1.bf16.msra.mxu0 %v755
      %777 = vmatprep.subr.bf16.mxu0 0
      %778 = vmatpush1.bf16.msra.mxu0 %v756
      %779 = vmatprep.subr.bf16.mxu0 0
      %780 = vmatpush1.bf16.msra.mxu0 %v757
      %781 = vmatprep.subr.bf16.mxu0 0
      %782 = vmatpush1.bf16.msra.mxu0 %v758
      %783 = vmatprep.subr.bf16.mxu0 0
      %784 = vmatpush1.bf16.msra.mxu0 0
      %785 = vmatprep.subr.bf16.mxu0 0
      %786 = vmatpush1.bf16.msra.mxu0 0
      %787 = vmatprep.subr.bf16.mxu0 0
      %788 = vmatpush1.bf16.msra.mxu0 0
      %789 = vmatprep.subr.bf16.mxu0 0
      %790 = vmatpush1.bf16.msra.mxu0 0
      %791 = vmatprep.subr.bf16.mxu0 0
      %792 = vmatpush1.bf16.msra.mxu0 0
      %793 = vmatprep.subr.bf16.mxu0 0
      %794 = vmatpush1.bf16.msra.mxu0 0
      %795 = vmatprep.subr.bf16.mxu0 0
      %796 = vmatpush1.bf16.msra.mxu0 0
      %797 = vmatprep.subr.bf16.mxu0 0
      %798 = vmatpush1.bf16.msra.mxu0 0
      %799 = vmatprep.mubr.bf16.mxu0 0
      %800 = vmatmul.mubr.bf16.gmra.mrb[0].mxu0 %v715
      %v801 = vpop.f32.mrb[0].mxu0
      %v802 = vadd.f32 0.0, %v801
      %v803 = vpop.f32.mrb[0].mxu0
      %v804 = vpop.f32.mrb[0].mxu0
      %v805 = vadd.f32 0.0, %v804
      %v806 = vpop.f32.mrb[0].mxu0
      %807 = vmatprep.mubr.bf16.mxu0 0
      %808 = vmatmul.mubr.bf16.gmra.mrb[0].mxu0 %v716
      %v809 = vpop.f32.mrb[0].mxu0
      %v810 = vadd.f32 0.0, %v809
      %v811 = vpop.f32.mrb[0].mxu0
      %v812 = vpop.f32.mrb[0].mxu0
      %v813 = vpop.f32.mrb[0].mxu0
      %814 = vdwg.mxu0
      %v815 = vadd.f32 %v686, %v802
      %v816 = vadd.f32 %v687, %v805
      %v817 = vadd.f32 %v688, %v810
      %v818 = vld [vmem:[%s288 + $0xc] sm:$0xf]
      %v819 = vld [vmem:[%s288 + $0x1c] sm:$0xf]
      %v820 = vld [vmem:[%s288 + $0x2c] sm:$0x3]
      %s821 = scalar_lea.vmem %s2, 256
      %v822 = vld [vmem:[%s821] sm:$0xf]
      %v823 = vld [vmem:[%s821 + $0x4] sm:$0xf]
      %v824 = vld [vmem:[%s821 + $0x8] sm:$0xf]
      %v825 = vld [vmem:[%s821 + $0xc] sm:$0xf]
      %v826 = vld [vmem:[%s821 + $0x10] sm:$0xf]
      %v827 = vld [vmem:[%s821 + $0x14] sm:$0xf]
      %v828 = vld [vmem:[%s821 + $0x18] sm:$0xf]
      %v829 = vld [vmem:[%s821 + $0x1c] sm:$0xf]
      %v830 = vld [vmem:[%s821 + $0x20] sm:$0xf]
      %v831 = vld [vmem:[%s821 + $0x24] sm:$0xf]
      %v832 = vld [vmem:[%s821 + $0x28] sm:$0xf]
      %v833 = vld [vmem:[%s821 + $0x2c] sm:$0xf]
      %v834 = vld [vmem:[%s821 + $0x30] sm:$0xf]
      %v835 = vld [vmem:[%s821 + $0x34] sm:$0xf]
      %v836 = vld [vmem:[%s821 + $0x38] sm:$0xf]
      %v837 = vld [vmem:[%s821 + $0x3c] sm:$0xf]
      %v841 = vunpack.c.l.b16 %v818
      %v842 = vunpack.c.l.b16 %v819
      %v843 = vunpack.c.l.b16 %v820
      %v844 = vpack.c.b16 %v842, %v841
      %v845 = vpack.c.b16 %v843, %v843
      %v864 = vunpack.c.l.b16 %v822
      %v865 = vunpack.c.l.b16 %v823
      %v866 = vunpack.c.l.b16 %v824
      %v867 = vunpack.c.l.b16 %v825
      %v868 = vunpack.c.l.b16 %v826
      %v869 = vunpack.c.l.b16 %v827
      %v870 = vunpack.c.l.b16 %v828
      %v871 = vunpack.c.l.b16 %v829
      %v872 = vunpack.c.l.b16 %v830
      %v873 = vunpack.c.l.b16 %v831
      %v874 = vunpack.c.l.b16 %v832
      %v875 = vunpack.c.l.b16 %v833
      %v876 = vunpack.c.l.b16 %v834
      %v877 = vunpack.c.l.b16 %v835
      %v878 = vunpack.c.l.b16 %v836
      %v879 = vunpack.c.l.b16 %v837
      %v880 = vpack.c.b16 %v865, %v864
      %v881 = vpack.c.b16 %v867, %v866
      %v882 = vpack.c.b16 %v869, %v868
      %v883 = vpack.c.b16 %v871, %v870
      %v884 = vpack.c.b16 %v873, %v872
      %v885 = vpack.c.b16 %v875, %v874
      %v886 = vpack.c.b16 %v877, %v876
      %v887 = vpack.c.b16 %v879, %v878
      %896 = vmatprep.subr.bf16.mxu0 0
      %897 = vmatpush1.bf16.msra.mxu0 %v880
      %898 = vmatprep.subr.bf16.mxu0 0
      %899 = vmatpush1.bf16.msra.mxu0 %v881
      %900 = vmatprep.subr.bf16.mxu0 0
      %901 = vmatpush1.bf16.msra.mxu0 %v882
      %902 = vmatprep.subr.bf16.mxu0 0
      %903 = vmatpush1.bf16.msra.mxu0 %v883
      %904 = vmatprep.subr.bf16.mxu0 0
      %905 = vmatpush1.bf16.msra.mxu0 %v884
      %906 = vmatprep.subr.bf16.mxu0 0
      %907 = vmatpush1.bf16.msra.mxu0 %v885
      %908 = vmatprep.subr.bf16.mxu0 0
      %909 = vmatpush1.bf16.msra.mxu0 %v886
      %910 = vmatprep.subr.bf16.mxu0 0
      %911 = vmatpush1.bf16.msra.mxu0 %v887
      %912 = vmatprep.subr.bf16.mxu0 0
      %913 = vmatpush1.bf16.msra.mxu0 0
      %914 = vmatprep.subr.bf16.mxu0 0
      %915 = vmatpush1.bf16.msra.mxu0 0
      %916 = vmatprep.subr.bf16.mxu0 0
      %917 = vmatpush1.bf16.msra.mxu0 0
      %918 = vmatprep.subr.bf16.mxu0 0
      %919 = vmatpush1.bf16.msra.mxu0 0
      %920 = vmatprep.subr.bf16.mxu0 0
      %921 = vmatpush1.bf16.msra.mxu0 0
      %922 = vmatprep.subr.bf16.mxu0 0
      %923 = vmatpush1.bf16.msra.mxu0 0
      %924 = vmatprep.subr.bf16.mxu0 0
      %925 = vmatpush1.bf16.msra.mxu0 0
      %926 = vmatprep.subr.bf16.mxu0 0
      %927 = vmatpush1.bf16.msra.mxu0 0
      %928 = vmatprep.mubr.bf16.mxu0 0
      %929 = vmatmul.mubr.bf16.gmra.mrb[0].mxu0 %v844
      %v930 = vpop.f32.mrb[0].mxu0
      %v931 = vadd.f32 0.0, %v930
      %v932 = vpop.f32.mrb[0].mxu0
      %v933 = vpop.f32.mrb[0].mxu0
      %v934 = vadd.f32 0.0, %v933
      %v935 = vpop.f32.mrb[0].mxu0
      %936 = vmatprep.mubr.bf16.mxu0 0
      %937 = vmatmul.mubr.bf16.gmra.mrb[0].mxu0 %v845
      %v938 = vpop.f32.mrb[0].mxu0
      %v939 = vadd.f32 0.0, %v938
      %v940 = vpop.f32.mrb[0].mxu0
      %v941 = vpop.f32.mrb[0].mxu0
      %v942 = vpop.f32.mrb[0].mxu0
      %943 = vdwg.mxu0
      %v944 = vadd.f32 %v815, %v931
      %v945 = vadd.f32 %v816, %v934
      %v946 = vadd.f32 %v817, %v939
      %v947 = vld [vmem:[%s288 + $0x28] sm:$0x7]
      %s948 = scalar_lea.vmem %s2, 320
      %v949 = vld [vmem:[%s948] sm:$0xf]
      %v950 = vld [vmem:[%s948 + $0x4] sm:$0xf]
      %v951 = vld [vmem:[%s948 + $0x8] sm:$0xf]
      %v952 = vld [vmem:[%s948 + $0xc] sm:$0xf]
      %v953 = vld [vmem:[%s948 + $0x10] sm:$0xf]
      %v954 = vld [vmem:[%s948 + $0x14] sm:$0xf]
      %v955 = vld [vmem:[%s948 + $0x18] sm:$0xf]
      %v956 = vld [vmem:[%s948 + $0x1c] sm:$0xf]
      %v957 = vld [vmem:[%s948 + $0x20] sm:$0xf]
      %v958 = vld [vmem:[%s948 + $0x24] sm:$0xf]
      %v959 = vld [vmem:[%s948 + $0x28] sm:$0xf]
      %v960 = vld [vmem:[%s948 + $0x2c] sm:$0xf]
      %v961 = vld [vmem:[%s948 + $0x30] sm:$0xf]
      %v962 = vld [vmem:[%s948 + $0x34] sm:$0xf]
      %v963 = vld [vmem:[%s948 + $0x38] sm:$0xf]
      %v964 = vld [vmem:[%s948 + $0x3c] sm:$0xf]
      %v966 = vunpack.c.l.b16 %v947
      %v967 = vpack.c.b16 %v966, %v966
      %v969 = vshrl.u32 %v715, 16
      %v971 = vshll.u32 %v715, 16
      %v973 = vrot.slane %v971, 1
      %v974 = vor.u32 %v969, %v973
      %v976 = vshll.u32 %v967, 16
      %v978 = vrot.slane %v976, 1
      %v979 = vsel %vm572, %v974, %v978
      %v980 = vshrl.u32 %v967, 16
      %v982 = vor.u32 %v980, %v978
      %v1001 = vunpack.c.l.b16 %v949
      %v1002 = vunpack.c.l.b16 %v950
      %v1003 = vunpack.c.l.b16 %v951
      %v1004 = vunpack.c.l.b16 %v952
      %v1005 = vunpack.c.l.b16 %v953
      %v1006 = vunpack.c.l.b16 %v954
      %v1007 = vunpack.c.l.b16 %v955
      %v1008 = vunpack.c.l.b16 %v956
      %v1009 = vunpack.c.l.b16 %v957
      %v1010 = vunpack.c.l.b16 %v958
      %v1011 = vunpack.c.l.b16 %v959
      %v1012 = vunpack.c.l.b16 %v960
      %v1013 = vunpack.c.l.b16 %v961
      %v1014 = vunpack.c.l.b16 %v962
      %v1015 = vunpack.c.l.b16 %v963
      %v1016 = vunpack.c.l.b16 %v964
      %v1017 = vpack.c.b16 %v1002, %v1001
      %v1018 = vpack.c.b16 %v1004, %v1003
      %v1019 = vpack.c.b16 %v1006, %v1005
      %v1020 = vpack.c.b16 %v1008, %v1007
      %v1021 = vpack.c.b16 %v1010, %v1009
      %v1022 = vpack.c.b16 %v1012, %v1011
      %v1023 = vpack.c.b16 %v1014, %v1013
      %v1024 = vpack.c.b16 %v1016, %v1015
      %1033 = vmatprep.subr.bf16.mxu0 0
      %1034 = vmatpush1.bf16.msra.mxu0 %v1017
      %1035 = vmatprep.subr.bf16.mxu0 0
      %1036 = vmatpush1.bf16.msra.mxu0 %v1018
      %1037 = vmatprep.subr.bf16.mxu0 0
      %1038 = vmatpush1.bf16.msra.mxu0 %v1019
      %1039 = vmatprep.subr.bf16.mxu0 0
      %1040 = vmatpush1.bf16.msra.mxu0 %v1020
      %1041 = vmatprep.subr.bf16.mxu0 0
      %1042 = vmatpush1.bf16.msra.mxu0 %v1021
      %1043 = vmatprep.subr.bf16.mxu0 0
      %1044 = vmatpush1.bf16.msra.mxu0 %v1022
      %1045 = vmatprep.subr.bf16.mxu0 0
      %1046 = vmatpush1.bf16.msra.mxu0 %v1023
      %1047 = vmatprep.subr.bf16.mxu0 0
      %1048 = vmatpush1.bf16.msra.mxu0 %v1024
      %1049 = vmatprep.subr.bf16.mxu0 0
      %1050 = vmatpush1.bf16.msra.mxu0 0
      %1051 = vmatprep.subr.bf16.mxu0 0
      %1052 = vmatpush1.bf16.msra.mxu0 0
      %1053 = vmatprep.subr.bf16.mxu0 0
      %1054 = vmatpush1.bf16.msra.mxu0 0
      %1055 = vmatprep.subr.bf16.mxu0 0
      %1056 = vmatpush1.bf16.msra.mxu0 0
      %1057 = vmatprep.subr.bf16.mxu0 0
      %1058 = vmatpush1.bf16.msra.mxu0 0
      %1059 = vmatprep.subr.bf16.mxu0 0
      %1060 = vmatpush1.bf16.msra.mxu0 0
      %1061 = vmatprep.subr.bf16.mxu0 0
      %1062 = vmatpush1.bf16.msra.mxu0 0
      %1063 = vmatprep.subr.bf16.mxu0 0
      %1064 = vmatpush1.bf16.msra.mxu0 0
      %1065 = vmatprep.mubr.bf16.mxu0 0
      %1066 = vmatmul.mubr.bf16.gmra.mrb[0].mxu0 %v979
      %v1067 = vpop.f32.mrb[0].mxu0
      %v1068 = vadd.f32 0.0, %v1067
      %v1069 = vpop.f32.mrb[0].mxu0
      %v1070 = vpop.f32.mrb[0].mxu0
      %v1071 = vadd.f32 0.0, %v1070
      %v1072 = vpop.f32.mrb[0].mxu0
      %1073 = vmatprep.mubr.bf16.mxu0 0
      %1074 = vmatmul.mubr.bf16.gmra.mrb[0].mxu0 %v982
      %v1075 = vpop.f32.mrb[0].mxu0
      %v1076 = vadd.f32 0.0, %v1075
      %v1077 = vpop.f32.mrb[0].mxu0
      %v1078 = vpop.f32.mrb[0].mxu0
      %v1079 = vpop.f32.mrb[0].mxu0
      %1080 = vdwg.mxu0
      %v1081 = vadd.f32 %v944, %v1068
      %v1082 = vadd.f32 %v945, %v1071
      %v1083 = vadd.f32 %v946, %v1076
      %v1084 = vld [vmem:[%s288] sm:$0xc]
      %v1085 = vld [vmem:[%s288 + $0x10] sm:$0xf]
      %v1086 = vld [vmem:[%s288 + $0x20] sm:$0xf]
      %v1087 = vld [vmem:[%s288 + $0x30] sm:$0x1]
      %s1088 = scalar_lea.vmem %s2, 384
      %v1089 = vld [vmem:[%s1088] sm:$0xf]
      %v1090 = vld [vmem:[%s1088 + $0x4] sm:$0xf]
      %v1091 = vld [vmem:[%s1088 + $0x8] sm:$0xf]
      %v1092 = vld [vmem:[%s1088 + $0xc] sm:$0xf]
      %v1093 = vld [vmem:[%s1088 + $0x10] sm:$0xf]
      %v1094 = vld [vmem:[%s1088 + $0x14] sm:$0xf]
      %v1095 = vld [vmem:[%s1088 + $0x18] sm:$0xf]
      %v1096 = vld [vmem:[%s1088 + $0x1c] sm:$0xf]
      %v1097 = vld [vmem:[%s1088 + $0x20] sm:$0xf]
      %v1098 = vld [vmem:[%s1088 + $0x24] sm:$0xf]
      %v1099 = vld [vmem:[%s1088 + $0x28] sm:$0xf]
      %v1100 = vld [vmem:[%s1088 + $0x2c] sm:$0xf]
      %v1101 = vld [vmem:[%s1088 + $0x30] sm:$0xf]
      %v1102 = vld [vmem:[%s1088 + $0x34] sm:$0xf]
      %v1103 = vld [vmem:[%s1088 + $0x38] sm:$0xf]
      %v1104 = vld [vmem:[%s1088 + $0x3c] sm:$0xf]
      %v1109 = vunpack.c.l.b16 %v1084
      %v1110 = vunpack.c.l.b16 %v1085
      %v1111 = vunpack.c.l.b16 %v1086
      %v1112 = vunpack.c.l.b16 %v1087
      %v1113 = vpack.c.b16 %v1110, %v1109
      %v1114 = vpack.c.b16 %v1112, %v1111
      %vm1115 = vsmask.f32 5376
      %v1117 = vshrl.u32 %v1113, 16
      %v1119 = vrot.slane %v1117, 2
      %v1120 = vshll.u32 %v1113, 16
      %v1122 = vrot.slane %v1120, 3
      %v1123 = vor.u32 %v1119, %v1122
      %v1125 = vshrl.u32 %v1114, 16
      %v1127 = vrot.slane %v1125, 2
      %v1128 = vshll.u32 %v1114, 16
      %v1130 = vrot.slane %v1128, 3
      %v1131 = vor.u32 %v1127, %v1130
      %v1132 = vsel %vm1115, %v1123, %v1131
      %v1151 = vunpack.c.l.b16 %v1089
      %v1152 = vunpack.c.l.b16 %v1090
      %v1153 = vunpack.c.l.b16 %v1091
      %v1154 = vunpack.c.l.b16 %v1092
      %v1155 = vunpack.c.l.b16 %v1093
      %v1156 = vunpack.c.l.b16 %v1094
      %v1157 = vunpack.c.l.b16 %v1095
      %v1158 = vunpack.c.l.b16 %v1096
      %v1159 = vunpack.c.l.b16 %v1097
      %v1160 = vunpack.c.l.b16 %v1098
      %v1161 = vunpack.c.l.b16 %v1099
      %v1162 = vunpack.c.l.b16 %v1100
      %v1163 = vunpack.c.l.b16 %v1101
      %v1164 = vunpack.c.l.b16 %v1102
      %v1165 = vunpack.c.l.b16 %v1103
      %v1166 = vunpack.c.l.b16 %v1104
      %v1167 = vpack.c.b16 %v1152, %v1151
      %v1168 = vpack.c.b16 %v1154, %v1153
      %v1169 = vpack.c.b16 %v1156, %v1155
      %v1170 = vpack.c.b16 %v1158, %v1157
      %v1171 = vpack.c.b16 %v1160, %v1159
      %v1172 = vpack.c.b16 %v1162, %v1161
      %v1173 = vpack.c.b16 %v1164, %v1163
      %v1174 = vpack.c.b16 %v1166, %v1165
      %1183 = vmatprep.subr.bf16.mxu0 0
      %1184 = vmatpush1.bf16.msra.mxu0 %v1167
      %1185 = vmatprep.subr.bf16.mxu0 0
      %1186 = vmatpush1.bf16.msra.mxu0 %v1168
      %1187 = vmatprep.subr.bf16.mxu0 0
      %1188 = vmatpush1.bf16.msra.mxu0 %v1169
      %1189 = vmatprep.subr.bf16.mxu0 0
      %1190 = vmatpush1.bf16.msra.mxu0 %v1170
      %1191 = vmatprep.subr.bf16.mxu0 0
      %1192 = vmatpush1.bf16.msra.mxu0 %v1171
      %1193 = vmatprep.subr.bf16.mxu0 0
      %1194 = vmatpush1.bf16.msra.mxu0 %v1172
      %1195 = vmatprep.subr.bf16.mxu0 0
      %1196 = vmatpush1.bf16.msra.mxu0 %v1173
      %1197 = vmatprep.subr.bf16.mxu0 0
      %1198 = vmatpush1.bf16.msra.mxu0 %v1174
      %1199 = vmatprep.subr.bf16.mxu0 0
      %1200 = vmatpush1.bf16.msra.mxu0 0
      %1201 = vmatprep.subr.bf16.mxu0 0
      %1202 = vmatpush1.bf16.msra.mxu0 0
      %1203 = vmatprep.subr.bf16.mxu0 0
      %1204 = vmatpush1.bf16.msra.mxu0 0
      %1205 = vmatprep.subr.bf16.mxu0 0
      %1206 = vmatpush1.bf16.msra.mxu0 0
      %1207 = vmatprep.subr.bf16.mxu0 0
      %1208 = vmatpush1.bf16.msra.mxu0 0
      %1209 = vmatprep.subr.bf16.mxu0 0
      %1210 = vmatpush1.bf16.msra.mxu0 0
      %1211 = vmatprep.subr.bf16.mxu0 0
      %1212 = vmatpush1.bf16.msra.mxu0 0
      %1213 = vmatprep.subr.bf16.mxu0 0
      %1214 = vmatpush1.bf16.msra.mxu0 0
      %1215 = vmatprep.mubr.bf16.mxu0 0
      %1216 = vmatmul.mubr.bf16.gmra.mrb[0].mxu0 %v1132
      %v1217 = vpop.f32.mrb[0].mxu0
      %v1218 = vadd.f32 0.0, %v1217
      %v1219 = vpop.f32.mrb[0].mxu0
      %v1220 = vpop.f32.mrb[0].mxu0
      %v1221 = vadd.f32 0.0, %v1220
      %v1222 = vpop.f32.mrb[0].mxu0
      %1223 = vmatprep.mubr.bf16.mxu0 0
      %1224 = vmatmul.mubr.bf16.gmra.mrb[0].mxu0 %v1131
      %v1225 = vpop.f32.mrb[0].mxu0
      %v1226 = vadd.f32 0.0, %v1225
      %v1227 = vpop.f32.mrb[0].mxu0
      %v1228 = vpop.f32.mrb[0].mxu0
      %v1229 = vpop.f32.mrb[0].mxu0
      %1230 = vdwg.mxu0
      %v1231 = vadd.f32 %v1081, %v1218
      %v1232 = vadd.f32 %v1082, %v1221
      %v1233 = vadd.f32 %v1083, %v1226
      %v1234 = vld [vmem:[%s288 + $0x4] sm:$0xc]
      %v1235 = vld [vmem:[%s288 + $0x14] sm:$0xf]
      %v1236 = vld [vmem:[%s288 + $0x24] sm:$0xf]
      %v1237 = vld [vmem:[%s288 + $0x34] sm:$0x1]
      %s1238 = scalar_lea.vmem %s2, 448
      %v1239 = vld [vmem:[%s1238] sm:$0xf]
      %v1240 = vld [vmem:[%s1238 + $0x4] sm:$0xf]
      %v1241 = vld [vmem:[%s1238 + $0x8] sm:$0xf]
      %v1242 = vld [vmem:[%s1238 + $0xc] sm:$0xf]
      %v1243 = vld [vmem:[%s1238 + $0x10] sm:$0xf]
      %v1244 = vld [vmem:[%s1238 + $0x14] sm:$0xf]
      %v1245 = vld [vmem:[%s1238 + $0x18] sm:$0xf]
      %v1246 = vld [vmem:[%s1238 + $0x1c] sm:$0xf]
      %v1247 = vld [vmem:[%s1238 + $0x20] sm:$0xf]
      %v1248 = vld [vmem:[%s1238 + $0x24] sm:$0xf]
      %v1249 = vld [vmem:[%s1238 + $0x28] sm:$0xf]
      %v1250 = vld [vmem:[%s1238 + $0x2c] sm:$0xf]
      %v1251 = vld [vmem:[%s1238 + $0x30] sm:$0xf]
      %v1252 = vld [vmem:[%s1238 + $0x34] sm:$0xf]
      %v1253 = vld [vmem:[%s1238 + $0x38] sm:$0xf]
      %v1254 = vld [vmem:[%s1238 + $0x3c] sm:$0xf]
      %v1259 = vunpack.c.l.b16 %v1234
      %v1260 = vunpack.c.l.b16 %v1235
      %v1261 = vunpack.c.l.b16 %v1236
      %v1262 = vunpack.c.l.b16 %v1237
      %v1263 = vpack.c.b16 %v1260, %v1259
      %v1264 = vpack.c.b16 %v1262, %v1261
      %v1266 = vshrl.u32 %v1263, 16
      %v1268 = vrot.slane %v1266, 2
      %v1269 = vshll.u32 %v1263, 16
      %v1271 = vrot.slane %v1269, 3
      %v1272 = vor.u32 %v1268, %v1271
      %v1274 = vshrl.u32 %v1264, 16
      %v1276 = vrot.slane %v1274, 2
      %v1277 = vshll.u32 %v1264, 16
      %v1279 = vrot.slane %v1277, 3
      %v1280 = vor.u32 %v1276, %v1279
      %v1281 = vsel %vm1115, %v1272, %v1280
      %v1300 = vunpack.c.l.b16 %v1239
      %v1301 = vunpack.c.l.b16 %v1240
      %v1302 = vunpack.c.l.b16 %v1241
      %v1303 = vunpack.c.l.b16 %v1242
      %v1304 = vunpack.c.l.b16 %v1243
      %v1305 = vunpack.c.l.b16 %v1244
      %v1306 = vunpack.c.l.b16 %v1245
      %v1307 = vunpack.c.l.b16 %v1246
      %v1308 = vunpack.c.l.b16 %v1247
      %v1309 = vunpack.c.l.b16 %v1248
      %v1310 = vunpack.c.l.b16 %v1249
      %v1311 = vunpack.c.l.b16 %v1250
      %v1312 = vunpack.c.l.b16 %v1251
      %v1313 = vunpack.c.l.b16 %v1252
      %v1314 = vunpack.c.l.b16 %v1253
      %v1315 = vunpack.c.l.b16 %v1254
      %v1316 = vpack.c.b16 %v1301, %v1300
      %v1317 = vpack.c.b16 %v1303, %v1302
      %v1318 = vpack.c.b16 %v1305, %v1304
      %v1319 = vpack.c.b16 %v1307, %v1306
      %v1320 = vpack.c.b16 %v1309, %v1308
      %v1321 = vpack.c.b16 %v1311, %v1310
      %v1322 = vpack.c.b16 %v1313, %v1312
      %v1323 = vpack.c.b16 %v1315, %v1314
      %1332 = vmatprep.subr.bf16.mxu0 0
      %1333 = vmatpush1.bf16.msra.mxu0 %v1316
      %1334 = vmatprep.subr.bf16.mxu0 0
      %1335 = vmatpush1.bf16.msra.mxu0 %v1317
      %1336 = vmatprep.subr.bf16.mxu0 0
      %1337 = vmatpush1.bf16.msra.mxu0 %v1318
      %1338 = vmatprep.subr.bf16.mxu0 0
      %1339 = vmatpush1.bf16.msra.mxu0 %v1319
      %1340 = vmatprep.subr.bf16.mxu0 0
      %1341 = vmatpush1.bf16.msra.mxu0 %v1320
      %1342 = vmatprep.subr.bf16.mxu0 0
      %1343 = vmatpush1.bf16.msra.mxu0 %v1321
      %1344 = vmatprep.subr.bf16.mxu0 0
      %1345 = vmatpush1.bf16.msra.mxu0 %v1322
      %1346 = vmatprep.subr.bf16.mxu0 0
      %1347 = vmatpush1.bf16.msra.mxu0 %v1323
      %1348 = vmatprep.subr.bf16.mxu0 0
      %1349 = vmatpush1.bf16.msra.mxu0 0
      %1350 = vmatprep.subr.bf16.mxu0 0
      %1351 = vmatpush1.bf16.msra.mxu0 0
      %1352 = vmatprep.subr.bf16.mxu0 0
      %1353 = vmatpush1.bf16.msra.mxu0 0
      %1354 = vmatprep.subr.bf16.mxu0 0
      %1355 = vmatpush1.bf16.msra.mxu0 0
      %1356 = vmatprep.subr.bf16.mxu0 0
      %1357 = vmatpush1.bf16.msra.mxu0 0
      %1358 = vmatprep.subr.bf16.mxu0 0
      %1359 = vmatpush1.bf16.msra.mxu0 0
      %1360 = vmatprep.subr.bf16.mxu0 0
      %1361 = vmatpush1.bf16.msra.mxu0 0
      %1362 = vmatprep.subr.bf16.mxu0 0
      %1363 = vmatpush1.bf16.msra.mxu0 0
      %1364 = vmatprep.mubr.bf16.mxu0 0
      %1365 = vmatmul.mubr.bf16.gmra.mrb[0].mxu0 %v1281
      %v1366 = vpop.f32.mrb[0].mxu0
      %v1367 = vadd.f32 0.0, %v1366
      %v1368 = vpop.f32.mrb[0].mxu0
      %v1369 = vpop.f32.mrb[0].mxu0
      %v1370 = vadd.f32 0.0, %v1369
      %v1371 = vpop.f32.mrb[0].mxu0
      %1372 = vmatprep.mubr.bf16.mxu0 0
      %1373 = vmatmul.mubr.bf16.gmra.mrb[0].mxu0 %v1280
      %v1374 = vpop.f32.mrb[0].mxu0
      %v1375 = vadd.f32 0.0, %v1374
      %v1376 = vpop.f32.mrb[0].mxu0
      %v1377 = vpop.f32.mrb[0].mxu0
      %v1378 = vpop.f32.mrb[0].mxu0
      %1379 = vdwg.mxu0
      %v1380 = vadd.f32 %v1231, %v1367
      %v1381 = vadd.f32 %v1232, %v1370
      %v1382 = vadd.f32 %v1233, %v1375
      %v1383 = vld [vmem:[%s288] sm:$0x8]
      %s1384 = scalar_lea.vmem %s2, 512
      %v1385 = vld [vmem:[%s1384] sm:$0xf]
      %v1386 = vld [vmem:[%s1384 + $0x4] sm:$0xf]
      %v1387 = vld [vmem:[%s1384 + $0x8] sm:$0xf]
      %v1388 = vld [vmem:[%s1384 + $0xc] sm:$0xf]
      %v1389 = vld [vmem:[%s1384 + $0x10] sm:$0xf]
      %v1390 = vld [vmem:[%s1384 + $0x14] sm:$0xf]
      %v1391 = vld [vmem:[%s1384 + $0x18] sm:$0xf]
      %v1392 = vld [vmem:[%s1384 + $0x1c] sm:$0xf]
      %v1393 = vld [vmem:[%s1384 + $0x20] sm:$0xf]
      %v1394 = vld [vmem:[%s1384 + $0x24] sm:$0xf]
      %v1395 = vld [vmem:[%s1384 + $0x28] sm:$0xf]
      %v1396 = vld [vmem:[%s1384 + $0x2c] sm:$0xf]
      %v1397 = vld [vmem:[%s1384 + $0x30] sm:$0xf]
      %v1398 = vld [vmem:[%s1384 + $0x34] sm:$0xf]
      %v1399 = vld [vmem:[%s1384 + $0x38] sm:$0xf]
      %v1400 = vld [vmem:[%s1384 + $0x3c] sm:$0xf]
      %v1402 = vunpack.c.l.b16 %v1383
      %v1403 = vpack.c.b16 %v1110, %v1402
      %vm1404 = vcmask 1044480
      %v1405 = vrot.slane %v1403, 3
      %v1406 = vrot.slane %v1114, 3
      %v1407 = vsel %vm1404, %v1405, %v1406
      %v1426 = vunpack.c.l.b16 %v1385
      %v1427 = vunpack.c.l.b16 %v1386
      %v1428 = vunpack.c.l.b16 %v1387
      %v1429 = vunpack.c.l.b16 %v1388
      %v1430 = vunpack.c.l.b16 %v1389
      %v1431 = vunpack.c.l.b16 %v1390
      %v1432 = vunpack.c.l.b16 %v1391
      %v1433 = vunpack.c.l.b16 %v1392
      %v1434 = vunpack.c.l.b16 %v1393
      %v1435 = vunpack.c.l.b16 %v1394
      %v1436 = vunpack.c.l.b16 %v1395
      %v1437 = vunpack.c.l.b16 %v1396
      %v1438 = vunpack.c.l.b16 %v1397
      %v1439 = vunpack.c.l.b16 %v1398
      %v1440 = vunpack.c.l.b16 %v1399
      %v1441 = vunpack.c.l.b16 %v1400
      %v1442 = vpack.c.b16 %v1427, %v1426
      %v1443 = vpack.c.b16 %v1429, %v1428
      %v1444 = vpack.c.b16 %v1431, %v1430
      %v1445 = vpack.c.b16 %v1433, %v1432
      %v1446 = vpack.c.b16 %v1435, %v1434
      %v1447 = vpack.c.b16 %v1437, %v1436
      %v1448 = vpack.c.b16 %v1439, %v1438
      %v1449 = vpack.c.b16 %v1441, %v1440
      %1458 = vmatprep.subr.bf16.mxu0 0
      %1459 = vmatpush1.bf16.msra.mxu0 %v1442
      %1460 = vmatprep.subr.bf16.mxu0 0
      %1461 = vmatpush1.bf16.msra.mxu0 %v1443
      %1462 = vmatprep.subr.bf16.mxu0 0
      %1463 = vmatpush1.bf16.msra.mxu0 %v1444
      %1464 = vmatprep.subr.bf16.mxu0 0
      %1465 = vmatpush1.bf16.msra.mxu0 %v1445
      %1466 = vmatprep.subr.bf16.mxu0 0
      %1467 = vmatpush1.bf16.msra.mxu0 %v1446
      %1468 = vmatprep.subr.bf16.mxu0 0
      %1469 = vmatpush1.bf16.msra.mxu0 %v1447
      %1470 = vmatprep.subr.bf16.mxu0 0
      %1471 = vmatpush1.bf16.msra.mxu0 %v1448
      %1472 = vmatprep.subr.bf16.mxu0 0
      %1473 = vmatpush1.bf16.msra.mxu0 %v1449
      %1474 = vmatprep.subr.bf16.mxu0 0
      %1475 = vmatpush1.bf16.msra.mxu0 0
      %1476 = vmatprep.subr.bf16.mxu0 0
      %1477 = vmatpush1.bf16.msra.mxu0 0
      %1478 = vmatprep.subr.bf16.mxu0 0
      %1479 = vmatpush1.bf16.msra.mxu0 0
      %1480 = vmatprep.subr.bf16.mxu0 0
      %1481 = vmatpush1.bf16.msra.mxu0 0
      %1482 = vmatprep.subr.bf16.mxu0 0
      %1483 = vmatpush1.bf16.msra.mxu0 0
      %1484 = vmatprep.subr.bf16.mxu0 0
      %1485 = vmatpush1.bf16.msra.mxu0 0
      %1486 = vmatprep.subr.bf16.mxu0 0
      %1487 = vmatpush1.bf16.msra.mxu0 0
      %1488 = vmatprep.subr.bf16.mxu0 0
      %1489 = vmatpush1.bf16.msra.mxu0 0
      %1490 = vmatprep.mubr.bf16.mxu0 0
      %1491 = vmatmul.mubr.bf16.gmra.mrb[0].mxu0 %v1407
      %v1492 = vpop.f32.mrb[0].mxu0
      %v1493 = vadd.f32 0.0, %v1492
      %v1494 = vpop.f32.mrb[0].mxu0
      %v1495 = vpop.f32.mrb[0].mxu0
      %v1496 = vadd.f32 0.0, %v1495
      %v1497 = vpop.f32.mrb[0].mxu0
      %1498 = vmatprep.mubr.bf16.mxu0 0
      %1499 = vmatmul.mubr.bf16.gmra.mrb[0].mxu0 %v1406
      %v1500 = vpop.f32.mrb[0].mxu0
      %v1501 = vadd.f32 0.0, %v1500
      %v1502 = vpop.f32.mrb[0].mxu0
      %v1503 = vpop.f32.mrb[0].mxu0
      %v1504 = vpop.f32.mrb[0].mxu0
      %1505 = vdwg.mxu0
      %v1506 = vadd.f32 %v1380, %v1493
      %v1507 = vadd.f32 %v1381, %v1496
      %v1508 = vadd.f32 %v1382, %v1501
      %v1509 = vld [vmem:[%s3] sm:$0x1]
      %v1511 = vlaneseq
      %v1512 = vshrl.u32 %v1511, 7
      %v1513 = vsub.s32 0, %v1512
      %v1514 = vrot.slane %v1509, %v1513
      %v1516 = vadd.f32 %v1506, %v1514
      %v1517 = vadd.f32 %v1507, %v1514
      %v1518 = vadd.f32 %v1508, %v1514
      %v1519 = vmax.f32 %v1516, 0.0
      %v1520 = vmax.f32 %v1517, 0.0
      %v1521 = vmax.f32 %v1518, 0.0
      %v1522 = vpack.c.bf16 %v1520, %v1519
      %v1523 = vpack.c.bf16 %v1521, %v1521
      %v1524 = vld [vmem:[%s4] sm:$0xf]
      %v1525 = vld [vmem:[%s4 + $0x4] sm:$0xf]
      %v1526 = vld [vmem:[%s4 + $0x8] sm:$0xf]
      %v1527 = vld [vmem:[%s4 + $0xc] sm:$0xf]
      %v1528 = vld [vmem:[%s4 + $0x10] sm:$0xf]
      %v1529 = vld [vmem:[%s4 + $0x14] sm:$0xf]
      %v1530 = vld [vmem:[%s4 + $0x18] sm:$0xf]
      %v1531 = vld [vmem:[%s4 + $0x1c] sm:$0xf]
      %v1532 = vld [vmem:[%s4 + $0x20] sm:$0xf]
      %v1533 = vld [vmem:[%s4 + $0x24] sm:$0xf]
      %v1534 = vld [vmem:[%s4 + $0x28] sm:$0xf]
      %v1535 = vld [vmem:[%s4 + $0x2c] sm:$0xf]
      %v1536 = vld [vmem:[%s4 + $0x30] sm:$0xf]
      %v1537 = vld [vmem:[%s4 + $0x34] sm:$0xf]
      %v1538 = vld [vmem:[%s4 + $0x38] sm:$0xf]
      %v1539 = vld [vmem:[%s4 + $0x3c] sm:$0xf]
      %v1540 = vld [vmem:[%s293] sm:$0xf]
      %v1541 = vld [vmem:[%s293 + $0x4] sm:$0xf]
      %v1542 = vld [vmem:[%s293 + $0x8] sm:$0x3]
      %v1543 = vld [vmem:[%s5] sm:$0xf]
      %v1544 = vld [vmem:[%s5 + $0x4] sm:$0xf]
      %v1545 = vld [vmem:[%s5 + $0x8] sm:$0xf]
      %v1546 = vld [vmem:[%s5 + $0xc] sm:$0xf]
      %v1547 = vld [vmem:[%s5 + $0x10] sm:$0xf]
      %v1548 = vld [vmem:[%s5 + $0x14] sm:$0xf]
      %v1549 = vld [vmem:[%s5 + $0x18] sm:$0xf]
      %v1550 = vld [vmem:[%s5 + $0x1c] sm:$0xf]
      %v1551 = vld [vmem:[%s5 + $0x20] sm:$0xf]
      %v1552 = vld [vmem:[%s5 + $0x24] sm:$0xf]
      %v1553 = vld [vmem:[%s5 + $0x28] sm:$0xf]
      %v1554 = vld [vmem:[%s5 + $0x2c] sm:$0xf]
      %v1555 = vld [vmem:[%s5 + $0x30] sm:$0xf]
      %v1556 = vld [vmem:[%s5 + $0x34] sm:$0xf]
      %v1557 = vld [vmem:[%s5 + $0x38] sm:$0xf]
      %v1558 = vld [vmem:[%s5 + $0x3c] sm:$0xf]
      %v1562 = vunpack.c.l.b16 %v1540
      %v1563 = vunpack.c.l.b16 %v1541
      %v1564 = vunpack.c.l.b16 %v1542
      %v1565 = vpack.c.b16 %v1563, %v1562
      %v1566 = vpack.c.b16 %v1564, %v1564
      %v1585 = vunpack.c.l.b16 %v1543
      %v1586 = vunpack.c.l.b16 %v1544
      %v1587 = vunpack.c.l.b16 %v1545
      %v1588 = vunpack.c.l.b16 %v1546
      %v1589 = vunpack.c.l.b16 %v1547
      %v1590 = vunpack.c.l.b16 %v1548
      %v1591 = vunpack.c.l.b16 %v1549
      %v1592 = vunpack.c.l.b16 %v1550
      %v1593 = vunpack.c.l.b16 %v1551
      %v1594 = vunpack.c.l.b16 %v1552
      %v1595 = vunpack.c.l.b16 %v1553
      %v1596 = vunpack.c.l.b16 %v1554
      %v1597 = vunpack.c.l.b16 %v1555
      %v1598 = vunpack.c.l.b16 %v1556
      %v1599 = vunpack.c.l.b16 %v1557
      %v1600 = vunpack.c.l.b16 %v1558
      %v1601 = vpack.c.b16 %v1586, %v1585
      %v1602 = vpack.c.b16 %v1588, %v1587
      %v1603 = vpack.c.b16 %v1590, %v1589
      %v1604 = vpack.c.b16 %v1592, %v1591
      %v1605 = vpack.c.b16 %v1594, %v1593
      %v1606 = vpack.c.b16 %v1596, %v1595
      %v1607 = vpack.c.b16 %v1598, %v1597
      %v1608 = vpack.c.b16 %v1600, %v1599
      %1617 = vmatprep.subr.bf16.mxu0 0
      %1618 = vmatpush1.bf16.msra.mxu0 %v1601
      %1619 = vmatprep.subr.bf16.mxu0 0
      %1620 = vmatpush1.bf16.msra.mxu0 %v1602
      %1621 = vmatprep.subr.bf16.mxu0 0
      %1622 = vmatpush1.bf16.msra.mxu0 %v1603
      %1623 = vmatprep.subr.bf16.mxu0 0
      %1624 = vmatpush1.bf16.msra.mxu0 %v1604
      %1625 = vmatprep.subr.bf16.mxu0 0
      %1626 = vmatpush1.bf16.msra.mxu0 %v1605
      %1627 = vmatprep.subr.bf16.mxu0 0
      %1628 = vmatpush1.bf16.msra.mxu0 %v1606
      %1629 = vmatprep.subr.bf16.mxu0 0
      %1630 = vmatpush1.bf16.msra.mxu0 %v1607
      %1631 = vmatprep.subr.bf16.mxu0 0
      %1632 = vmatpush1.bf16.msra.mxu0 %v1608
      %1633 = vmatprep.subr.bf16.mxu0 0
      %1634 = vmatpush1.bf16.msra.mxu0 0
      %1635 = vmatprep.subr.bf16.mxu0 0
      %1636 = vmatpush1.bf16.msra.mxu0 0
      %1637 = vmatprep.subr.bf16.mxu0 0
      %1638 = vmatpush1.bf16.msra.mxu0 0
      %1639 = vmatprep.subr.bf16.mxu0 0
      %1640 = vmatpush1.bf16.msra.mxu0 0
      %1641 = vmatprep.subr.bf16.mxu0 0
      %1642 = vmatpush1.bf16.msra.mxu0 0
      %1643 = vmatprep.subr.bf16.mxu0 0
      %1644 = vmatpush1.bf16.msra.mxu0 0
      %1645 = vmatprep.subr.bf16.mxu0 0
      %1646 = vmatpush1.bf16.msra.mxu0 0
      %1647 = vmatprep.subr.bf16.mxu0 0
      %1648 = vmatpush1.bf16.msra.mxu0 0
      %1649 = vmatprep.mubr.bf16.mxu0 0
      %1650 = vmatmul.mubr.bf16.gmra.mrb[0].mxu0 %v1565
      %v1651 = vpop.f32.mrb[0].mxu0
      %v1652 = vadd.f32 0.0, %v1651
      %v1653 = vpop.f32.mrb[0].mxu0
      %v1654 = vpop.f32.mrb[0].mxu0
      %v1655 = vadd.f32 0.0, %v1654
      %v1656 = vpop.f32.mrb[0].mxu0
      %1657 = vmatprep.mubr.bf16.mxu0 0
      %1658 = vmatmul.mubr.bf16.gmra.mrb[0].mxu0 %v1566
      %v1659 = vpop.f32.mrb[0].mxu0
      %v1660 = vadd.f32 0.0, %v1659
      %v1661 = vpop.f32.mrb[0].mxu0
      %v1662 = vpop.f32.mrb[0].mxu0
      %v1663 = vpop.f32.mrb[0].mxu0
      %1664 = vdwg.mxu0
      %v1681 = vunpack.c.l.b16 %v1524
      %v1682 = vunpack.c.l.b16 %v1525
      %v1683 = vunpack.c.l.b16 %v1526
      %v1684 = vunpack.c.l.b16 %v1527
      %v1685 = vunpack.c.l.b16 %v1528
      %v1686 = vunpack.c.l.b16 %v1529
      %v1687 = vunpack.c.l.b16 %v1530
      %v1688 = vunpack.c.l.b16 %v1531
      %v1689 = vunpack.c.l.b16 %v1532
      %v1690 = vunpack.c.l.b16 %v1533
      %v1691 = vunpack.c.l.b16 %v1534
      %v1692 = vunpack.c.l.b16 %v1535
      %v1693 = vunpack.c.l.b16 %v1536
      %v1694 = vunpack.c.l.b16 %v1537
      %v1695 = vunpack.c.l.b16 %v1538
      %v1696 = vunpack.c.l.b16 %v1539
      %v1697 = vpack.c.b16 %v1682, %v1681
      %v1698 = vpack.c.b16 %v1684, %v1683
      %v1699 = vpack.c.b16 %v1686, %v1685
      %v1700 = vpack.c.b16 %v1688, %v1687
      %v1701 = vpack.c.b16 %v1690, %v1689
      %v1702 = vpack.c.b16 %v1692, %v1691
      %v1703 = vpack.c.b16 %v1694, %v1693
      %v1704 = vpack.c.b16 %v1696, %v1695
      %1713 = vmatprep.subr.bf16.mxu0 0
      %1714 = vmatpush1.bf16.msra.mxu0 %v1697
      %1715 = vmatprep.subr.bf16.mxu0 0
      %1716 = vmatpush1.bf16.msra.mxu0 %v1698
      %1717 = vmatprep.subr.bf16.mxu0 0
      %1718 = vmatpush1.bf16.msra.mxu0 %v1699
      %1719 = vmatprep.subr.bf16.mxu0 0
      %1720 = vmatpush1.bf16.msra.mxu0 %v1700
      %1721 = vmatprep.subr.bf16.mxu0 0
      %1722 = vmatpush1.bf16.msra.mxu0 %v1701
      %1723 = vmatprep.subr.bf16.mxu0 0
      %1724 = vmatpush1.bf16.msra.mxu0 %v1702
      %1725 = vmatprep.subr.bf16.mxu0 0
      %1726 = vmatpush1.bf16.msra.mxu0 %v1703
      %1727 = vmatprep.subr.bf16.mxu0 0
      %1728 = vmatpush1.bf16.msra.mxu0 %v1704
      %1729 = vmatprep.subr.bf16.mxu0 0
      %1730 = vmatpush1.bf16.msra.mxu0 0
      %1731 = vmatprep.subr.bf16.mxu0 0
      %1732 = vmatpush1.bf16.msra.mxu0 0
      %1733 = vmatprep.subr.bf16.mxu0 0
      %1734 = vmatpush1.bf16.msra.mxu0 0
      %1735 = vmatprep.subr.bf16.mxu0 0
      %1736 = vmatpush1.bf16.msra.mxu0 0
      %1737 = vmatprep.subr.bf16.mxu0 0
      %1738 = vmatpush1.bf16.msra.mxu0 0
      %1739 = vmatprep.subr.bf16.mxu0 0
      %1740 = vmatpush1.bf16.msra.mxu0 0
      %1741 = vmatprep.subr.bf16.mxu0 0
      %1742 = vmatpush1.bf16.msra.mxu0 0
      %1743 = vmatprep.subr.bf16.mxu0 0
      %1744 = vmatpush1.bf16.msra.mxu0 0
      %1745 = vmatprep.mubr.bf16.mxu0 0
      %1746 = vmatmul.mubr.bf16.gmra.mrb[0].mxu0 %v1522
      %v1747 = vpop.f32.mrb[0].mxu0
      %v1748 = vadd.f32 %v1652, %v1747
      %v1749 = vpop.f32.mrb[0].mxu0
      %v1750 = vpop.f32.mrb[0].mxu0
      %v1751 = vadd.f32 %v1655, %v1750
      %v1752 = vpop.f32.mrb[0].mxu0
      %1753 = vmatprep.mubr.bf16.mxu0 0
      %1754 = vmatmul.mubr.bf16.gmra.mrb[0].mxu0 %v1523
      %v1755 = vpop.f32.mrb[0].mxu0
      %v1756 = vadd.f32 %v1660, %v1755
      %v1757 = vpop.f32.mrb[0].mxu0
      %v1758 = vpop.f32.mrb[0].mxu0
      %v1759 = vpop.f32.mrb[0].mxu0
      %1760 = vdwg.mxu0
      %v1761 = vld [vmem:[%s6] sm:$0x1]
      %v1763 = vlaneseq
      %v1764 = vshrl.u32 %v1763, 7
      %v1765 = vsub.s32 0, %v1764
      %v1766 = vrot.slane %v1761, %v1765
      %v1768 = vadd.f32 %v1748, %v1766
      %v1769 = vadd.f32 %v1751, %v1766
      %v1770 = vadd.f32 %v1756, %v1766
      %v1771 = vmax.f32 %v1768, 0.0
      %v1772 = vmax.f32 %v1769, 0.0
      %v1773 = vmax.f32 %v1770, 0.0
      %v1774 = vpack.c.bf16 %v1772, %v1771
      %v1775 = vpack.c.bf16 %v1773, %v1773
      %v1778 = vunpack.c.l.b16 %v1774
      %v1779 = vunpack.c.h.b16 %v1774
      %v1780 = vunpack.c.l.b16 %v1775
      %v1781 = vpack.c.b16 %v1778, %v1778
      %v1782 = vpack.c.b16 %v1779, %v1779
      %v1783 = vpack.c.b16 %v1780, %v1780
      %1787 = vst [vmem:[%s298] sm:$0xf] %v1781
      %1788 = vst [vmem:[%s298 + $0x4] sm:$0xf] %v1782
      %1789 = vst [vmem:[%s298 + $0x8] sm:$0x3] %v1783
      %p1790 = scmp.lt.s32.totalorder %s18, 7
      %s1791 = scalar_select %p1790, %s18, 7
      %s1792 = smul.addr %s1791, 3
      %s1793 = smul.addr %s1792, 4
      %s1794 = scalar_lea.vmem %s7, %s1793
      // Predicated region
      $region49: #{res_block_forward.3} parent=47 // pred_check
        %p1795 = pneg %p193
      $region50: #{res_block_forward.3} parent=47 // pred_check_branch
        %1797 = sbr.rel (%p1795) target = $region52
      $region51: #{res_block_forward.3} parent=47 // pred_region
        _
      $region52: #{res_block_forward.3} parent=47 // pred_fallthru
        _
    $region48: #{res_block_forward.3} parent=5 // pred_fallthru
      _
    %p1798 = scmp.le.s32.totalorder 2, %s13
    // Predicated region
    $region53: #{res_block_forward.3} parent=5 // pred_check
      %p1799 = pneg %p1798
    $region54: #{res_block_forward.3} parent=5 // pred_check_branch
      %1801 = sbr.rel (%p1799) target = $region56
    $region55: #{res_block_forward.3} parent=5 // pred_region
      %s1802 = ssub.s32 %s13, 2
      // Predicated region
      $region57: #{res_block_forward.3} parent=55 // pred_check
        %p1803 = pneg %p199
      $region58: #{res_block_forward.3} parent=55 // pred_check_branch
        %1805 = sbr.rel (%p1803) target = $region60
      $region59: #{res_block_forward.3} parent=55 // pred_region
        %p1806 = scmp.lt.s32.totalorder %s19, 7
        %s1807 = scalar_select %p1806, %s19, 7
        %s1808 = smul.addr %s1807, 3
        %s1809 = smul.addr %s1808, 4
        %s1810 = scalar_lea.vmem %s7, %s1809
      $region60: #{res_block_forward.3} parent=55 // pred_fallthru
        _
    $region56: #{res_block_forward.3} parent=5 // pred_fallthru
      _
  $region6: #{res_block_forward.3} parent=0 // loop_footer
    %s17 = sadd.s32 1, %s13
  $region7: #{res_block_forward.3} parent=0 // loop_footer_branch
    %12 = sbr.rel target = $region3
  $region8: #{res_block_forward.3} parent=0 // loop_exit
    _

</llo_original>
